<compile_context>
chip_gen: v6e
topology: v6e:2x2x1
jax: 0.10.0
libtpu: 0.0.40
codegen_flags: <defaults>
</compile_context>

<pallas_src>
import functools

import jax
import jax.numpy as jnp
from jax import lax
from jax.experimental import pallas as pl
from jax.experimental.pallas import tpu as pltpu


def _down_fused_kernel(xq_ref, w1_ref, b1_ref, w2_ref, b2_ref, o_ref,
                       pad1_ref, pad2_ref, *, K, Hp, Wp, Cin, Cmid, Cout):
    """Fused MaxPool2d(2) + (Conv3x3 + BN + ReLU) x 2 for one batch element.

    xq_ref:   (1, 4, Hp, Wp, Cin) -- axis 1 enumerates the 2x2 pooling window, NHWC.
    w1_ref:   (K*K*Cin, Cmid)     -- conv1 weights with BN scale folded in,
                                     row index = (kh*K + kw)*Cin + ci.
    b1_ref:   (1, Cmid)           -- conv1 bias folded through BN.
    w2_ref:   (K*K*Cmid, Cout), b2_ref: (1, Cout) -- same for conv2.
    o_ref:    (1, Hp, Wp, Cout)
    pad1_ref: VMEM (Hp+2, Wp+2, Cin)  scratch: zero-padded pooled input.
    pad2_ref: VMEM (Hp+2, Wp+2, Cmid) scratch: zero-padded intermediate activation.
    """
    # ---- MaxPool2d(2): reduce over the 4 pooling-window positions (leading axis) ----
    pooled = jnp.max(xq_ref[0], axis=0)                        # (Hp, Wp, Cin)

    # ---- conv1: pad=1 inside VMEM, single im2col matmul, bias + ReLU ----
    pad1_ref[...] = jnp.zeros_like(pad1_ref)
    pad1_ref[pl.ds(1, Hp), pl.ds(1, Wp), :] = pooled

    cols = []
    for kh in range(K):
        for kw in range(K):
            cols.append(
                pad1_ref[pl.ds(kh, Hp), pl.ds(kw, Wp), :].reshape(Hp * Wp, Cin))
    patches = jnp.concatenate(cols, axis=-1)                   # (Hp*Wp, K*K*Cin)
    h = jnp.dot(patches, w1_ref[...], preferred_element_type=jnp.float32)
    h = jnp.maximum(h + b1_ref[...], 0.0)                      # folded BN bias + ReLU

    # ---- conv2: same structure on the VMEM-resident intermediate activation ----
    pad2_ref[...] = jnp.zeros_like(pad2_ref)
    pad2_ref[pl.ds(1, Hp), pl.ds(1, Wp), :] = h.reshape(Hp, Wp, Cmid)

    cols = []
    for kh in range(K):
        for kw in range(K):
            cols.append(
                pad2_ref[pl.ds(kh, Hp), pl.ds(kw, Wp), :].reshape(Hp * Wp, Cmid))
    patches = jnp.concatenate(cols, axis=-1)                   # (Hp*Wp, K*K*Cmid)
    y = jnp.dot(patches, w2_ref[...], preferred_element_type=jnp.float32)
    y = jnp.maximum(y + b2_ref[...], 0.0)
    o_ref[0] = y.reshape(Hp, Wp, Cout)


def down_forward(x_nchw, params, K=3):
    """Pallas implementation of Down.forward. x_nchw: (N, Cin, H, W) float32."""
    N, Cin, H, W = x_nchw.shape
    assert H % 2 == 0 and W % 2 == 0
    Hp, Wp = H // 2, W // 2
    Cmid = params["w1"].shape[-1]
    Cout = params["w2"].shape[-1]

    # Single wrapper-side rearrangement: NCHW -> (N, 4, Hp, Wp, Cin), where axis 1
    # enumerates the 2x2 max-pool window.  One XLA transpose (same cost as the
    # unavoidable NCHW->NHWC layout change); no wrapper-side pads or extra passes.
    xq = (x_nchw.reshape(N, Cin, Hp, 2, Wp, 2)
          .transpose(0, 3, 5, 2, 4, 1)
          .reshape(N, 4, Hp, Wp, Cin))

    kern = functools.partial(_down_fused_kernel, K=K, Hp=Hp, Wp=Wp,
                             Cin=Cin, Cmid=Cmid, Cout=Cout)
    y = pl.pallas_call(
        kern,
        out_shape=jax.ShapeDtypeStruct((N, Hp, Wp, Cout), jnp.float32),
        grid=(N,),
        in_specs=[
            pl.BlockSpec((1, 4, Hp, Wp, Cin), lambda n: (n, 0, 0, 0, 0)),
            pl.BlockSpec((K * K * Cin, Cmid), lambda n: (0, 0)),
            pl.BlockSpec((1, Cmid), lambda n: (0, 0)),
            pl.BlockSpec((K * K * Cmid, Cout), lambda n: (0, 0)),
            pl.BlockSpec((1, Cout), lambda n: (0, 0)),
        ],
        out_specs=pl.BlockSpec((1, Hp, Wp, Cout), lambda n: (n, 0, 0, 0)),
        scratch_shapes=[
            pltpu.VMEM((Hp + 2, Wp + 2, Cin), jnp.float32),
            pltpu.VMEM((Hp + 2, Wp + 2, Cmid), jnp.float32),
        ],
        compiler_params=pltpu.CompilerParams(
            dimension_semantics=("parallel",),          # batch is fully independent
            vmem_limit_bytes=32 * 1024 * 1024,
        ),
    )(xq, params["w1"], params["bias1"], params["w2"], params["bias2"])

    return jnp.transpose(y, (0, 3, 1, 2))                                   # back to NCHW


def init_params(key, Cin, Cout, K=3):
    """Deterministic synthetic params for Down(Cin, Cout, kernel_size=3).

    BN (eval mode, running_mean=0, running_var=1) is folded: the scale goes into the
    conv weights, the shift (+ conv bias) into a per-channel bias.
    """
    Cmid = Cout  # DoubleConv default: mid_channels = out_channels
    ks = jax.random.split(key, 8)
    w1 = 0.1 * jax.random.normal(ks[0], (K, K, Cin, Cmid), jnp.float32)      # HWIO
    b1 = 0.1 * jax.random.normal(ks[1], (Cmid,), jnp.float32)
    g1 = 1.0 + 0.1 * jax.random.normal(ks[2], (Cmid,), jnp.float32)
    be1 = 0.1 * jax.random.normal(ks[3], (Cmid,), jnp.float32)
    w2 = 0.1 * jax.random.normal(ks[4], (K, K, Cmid, Cout), jnp.float32)
    b2 = 0.1 * jax.random.normal(ks[5], (Cout,), jnp.float32)
    g2 = 1.0 + 0.1 * jax.random.normal(ks[6], (Cout,), jnp.float32)
    be2 = 0.1 * jax.random.normal(ks[7], (Cout,), jnp.float32)

    eps = 1e-5
    mean1, var1 = jnp.zeros((Cmid,)), jnp.ones((Cmid,))   # BatchNorm2d running stats at init
    mean2, var2 = jnp.zeros((Cout,)), jnp.ones((Cout,))
    s1 = g1 / jnp.sqrt(var1 + eps)
    s2 = g2 / jnp.sqrt(var2 + eps)
    w1f = (w1 * s1).reshape(K * K * Cin, Cmid)            # BN scale folded into weights
    w2f = (w2 * s2).reshape(K * K * Cmid, Cout)
    bb1 = be1 + s1 * (b1 - mean1)                         # conv bias folded through BN
    bb2 = be2 + s2 * (b2 - mean2)

    return dict(
        w1=w1f, bias1=bb1.reshape(1, Cmid),
        w2=w2f, bias2=bb2.reshape(1, Cout),
    )


def ref_forward(x_nchw, params, K=3):
    """Pure-JAX reference (same folded-BN math) for verification."""
    N, Cin, H, W = x_nchw.shape
    x = jnp.transpose(x_nchw, (0, 2, 3, 1))
    pooled = lax.reduce_window(x, -jnp.inf, lax.max, (1, 2, 2, 1), (1, 2, 2, 1), "VALID")
    Cmid = params["w1"].shape[-1]
    Cout = params["w2"].shape[-1]
    w1 = params["w1"].reshape(K, K, Cin, Cmid)
    w2 = params["w2"].reshape(K, K, Cmid, Cout)
    dn1 = lax.conv_dimension_numbers(pooled.shape, w1.shape, ("NHWC", "HWIO", "NHWC"))
    h = lax.conv_general_dilated(pooled, w1, (1, 1), "SAME", dimension_numbers=dn1)
    h = jnp.maximum(h + params["bias1"][0], 0.0)
    dn2 = lax.conv_dimension_numbers(h.shape, w2.shape, ("NHWC", "HWIO", "NHWC"))
    y = lax.conv_general_dilated(h, w2, (1, 1), "SAME", dimension_numbers=dn2)
    y = jnp.maximum(y + params["bias2"][0], 0.0)
    return jnp.transpose(y, (0, 3, 1, 2))


if __name__ == "__main__":
    key = jax.random.PRNGKey(0)
    kx, kp = jax.random.split(key)
    N, Cin, H, W = 2, 4, 16, 16
    Cout = 8

    x = jax.random.normal(kx, (N, Cin, H, W), jnp.float32)
    params = init_params(kp, Cin, Cout)

    out = down_forward(x, params)
    out = jax.block_until_ready(out)

    assert out.shape == (N, Cout, H // 2, W // 2), out.shape
    ref = ref_forward(x, params)
    err = float(jnp.max(jnp.abs(out - ref)))
    assert jnp.allclose(out, ref, atol=1e-4, rtol=1e-4), f"max abs err = {err}"

    print("KERNEL_OK")
</pallas_src>

<mosaic_0001>
module attributes {stable_mosaic.version = 11 : i64} {
  func.func @_down_fused_kernel(%arg0: i32, %arg1: memref<1x4x8x8x4xf32, #tpu.memory_space<vmem>>, %arg2: memref<36x8xf32, #tpu.memory_space<vmem>>, %arg3: memref<1x8xf32, #tpu.memory_space<vmem>>, %arg4: memref<72x8xf32, #tpu.memory_space<vmem>>, %arg5: memref<1x8xf32, #tpu.memory_space<vmem>>, %arg6: memref<1x8x8x8xf32, #tpu.memory_space<vmem>>, %arg7: memref<10x10x4xf32, #tpu.memory_space<vmem>>, %arg8: memref<10x10x8xf32, #tpu.memory_space<vmem>>) attributes {dimension_semantics = [#tpu.dimension_semantics<parallel>], iteration_bounds = array<i64: 2>, scalar_prefetch = 0 : i64, scratch_operands = 2 : i64, tpu.core_type = #tpu.core_type<tc>, window_params = [{transform_indices = @transform_0, window_bounds = array<i64: 1, 4, 8, 8, 4>}, {pipeline_mode = #tpu.pipeline_mode<synchronous>, transform_indices = @transform_1, window_bounds = array<i64: 36, 8>}, {pipeline_mode = #tpu.pipeline_mode<synchronous>, transform_indices = @transform_2, window_bounds = array<i64: 1, 8>}, {pipeline_mode = #tpu.pipeline_mode<synchronous>, transform_indices = @transform_3, window_bounds = array<i64: 72, 8>}, {pipeline_mode = #tpu.pipeline_mode<synchronous>, transform_indices = @transform_4, window_bounds = array<i64: 1, 8>}, {transform_indices = @transform_5, window_bounds = array<i64: 1, 8, 8, 8>}]} {
    %c0 = arith.constant 0 : index
    %c0_0 = arith.constant 0 : index
    %c0_1 = arith.constant 0 : index
    %c0_2 = arith.constant 0 : index
    %c0_3 = arith.constant 0 : index
    %0 = vector.load %arg1[%c0, %c0_0, %c0_1, %c0_2, %c0_3] : memref<1x4x8x8x4xf32, #tpu.memory_space<vmem>>, vector<1x4x8x8x4xf32>
    %1 = vector.shape_cast %0 : vector<1x4x8x8x4xf32> to vector<4x8x8x4xf32>
    %cst = arith.constant dense<0xFF800000> : vector<8x8x4xf32>
    %2 = vector.multi_reduction <maximumf>, %1, %cst [0] : vector<4x8x8x4xf32> to vector<8x8x4xf32>
    %cst_4 = arith.constant 0.000000e+00 : f32
    %3 = vector.broadcast %cst_4 : f32 to vector<10x10x4xf32>
    %c0_5 = arith.constant 0 : index
    %c0_6 = arith.constant 0 : index
    %c0_7 = arith.constant 0 : index
    %4 = vector.load %arg7[%c0_5, %c0_6, %c0_7] : memref<10x10x4xf32, #tpu.memory_space<vmem>>, vector<10x10x4xf32>
    tpu.vector_store %arg7[%c0_5, %c0_6, %c0_7], %3 {strides = array<i32>} : memref<10x10x4xf32, #tpu.memory_space<vmem>>, vector<10x10x4xf32>,
    %c1 = arith.constant 1 : index
    %c1_8 = arith.constant 1 : index
    %c0_9 = arith.constant 0 : index
    %5 = vector.load %arg7[%c1, %c1_8, %c0_9] : memref<10x10x4xf32, #tpu.memory_space<vmem>>, vector<8x8x4xf32>
    tpu.vector_store %arg7[%c1, %c1_8, %c0_9], %2 {strides = array<i32>} : memref<10x10x4xf32, #tpu.memory_space<vmem>>, vector<8x8x4xf32>,
    %c0_10 = arith.constant 0 : index
    %c0_11 = arith.constant 0 : index
    %c0_12 = arith.constant 0 : index
    %6 = vector.load %arg7[%c0_10, %c0_11, %c0_12] : memref<10x10x4xf32, #tpu.memory_space<vmem>>, vector<8x8x4xf32>
    %7 = vector.shape_cast %6 : vector<8x8x4xf32> to vector<64x4xf32>
    %c0_13 = arith.constant 0 : index
    %c1_14 = arith.constant 1 : index
    %c0_15 = arith.constant 0 : index
    %8 = vector.load %arg7[%c0_13, %c1_14, %c0_15] : memref<10x10x4xf32, #tpu.memory_space<vmem>>, vector<8x8x4xf32>
    %9 = vector.shape_cast %8 : vector<8x8x4xf32> to vector<64x4xf32>
    %c0_16 = arith.constant 0 : index
    %c2 = arith.constant 2 : index
    %c0_17 = arith.constant 0 : index
    %10 = vector.load %arg7[%c0_16, %c2, %c0_17] : memref<10x10x4xf32, #tpu.memory_space<vmem>>, vector<8x8x4xf32>
    %11 = vector.shape_cast %10 : vector<8x8x4xf32> to vector<64x4xf32>
    %c1_18 = arith.constant 1 : index
    %c0_19 = arith.constant 0 : index
    %c0_20 = arith.constant 0 : index
    %12 = vector.load %arg7[%c1_18, %c0_19, %c0_20] : memref<10x10x4xf32, #tpu.memory_space<vmem>>, vector<8x8x4xf32>
    %13 = vector.shape_cast %12 : vector<8x8x4xf32> to vector<64x4xf32>
    %c1_21 = arith.constant 1 : index
    %c1_22 = arith.constant 1 : index
    %c0_23 = arith.constant 0 : index
    %14 = vector.load %arg7[%c1_21, %c1_22, %c0_23] : memref<10x10x4xf32, #tpu.memory_space<vmem>>, vector<8x8x4xf32>
    %15 = vector.shape_cast %14 : vector<8x8x4xf32> to vector<64x4xf32>
    %c1_24 = arith.constant 1 : index
    %c2_25 = arith.constant 2 : index
    %c0_26 = arith.constant 0 : index
    %16 = vector.load %arg7[%c1_24, %c2_25, %c0_26] : memref<10x10x4xf32, #tpu.memory_space<vmem>>, vector<8x8x4xf32>
    %17 = vector.shape_cast %16 : vector<8x8x4xf32> to vector<64x4xf32>
    %c2_27 = arith.constant 2 : index
    %c0_28 = arith.constant 0 : index
    %c0_29 = arith.constant 0 : index
    %18 = vector.load %arg7[%c2_27, %c0_28, %c0_29] : memref<10x10x4xf32, #tpu.memory_space<vmem>>, vector<8x8x4xf32>
    %19 = vector.shape_cast %18 : vector<8x8x4xf32> to vector<64x4xf32>
    %c2_30 = arith.constant 2 : index
    %c1_31 = arith.constant 1 : index
    %c0_32 = arith.constant 0 : index
    %20 = vector.load %arg7[%c2_30, %c1_31, %c0_32] : memref<10x10x4xf32, #tpu.memory_space<vmem>>, vector<8x8x4xf32>
    %21 = vector.shape_cast %20 : vector<8x8x4xf32> to vector<64x4xf32>
    %c2_33 = arith.constant 2 : index
    %c2_34 = arith.constant 2 : index
    %c0_35 = arith.constant 0 : index
    %22 = vector.load %arg7[%c2_33, %c2_34, %c0_35] : memref<10x10x4xf32, #tpu.memory_space<vmem>>, vector<8x8x4xf32>
    %23 = vector.shape_cast %22 : vector<8x8x4xf32> to vector<64x4xf32>
    %24 = tpu.concatenate %7, %9, %11, %13, %15, %17, %19, %21, %23 in 1 : vector<64x4xf32>, vector<64x4xf32>, vector<64x4xf32>, vector<64x4xf32>, vector<64x4xf32>, vector<64x4xf32>, vector<64x4xf32>, vector<64x4xf32>, vector<64x4xf32> -> vector<64x36xf32>
    %c0_36 = arith.constant 0 : index
    %c0_37 = arith.constant 0 : index
    %25 = vector.load %arg2[%c0_36, %c0_37] : memref<36x8xf32, #tpu.memory_space<vmem>>, vector<36x8xf32>
    %cst_38 = arith.constant dense<0.000000e+00> : vector<64x8xf32>
    %26 = tpu.matmul %24, %25, %cst_38 {dimension_numbers = #tpu.dot_dimension_numbers<[1], [0], [0], [1], [0, 0, 1, 1], [], []>} : vector<64x36xf32>, vector<36x8xf32>, vector<64x8xf32> -> vector<64x8xf32>
    %c0_39 = arith.constant 0 : index
    %c0_40 = arith.constant 0 : index
    %27 = vector.load %arg3[%c0_39, %c0_40] : memref<1x8xf32, #tpu.memory_space<vmem>>, vector<1x8xf32>
    %28 = vector.broadcast %27 : vector<1x8xf32> to vector<64x8xf32>
    %29 = arith.addf %26, %28 : vector<64x8xf32>
    %cst_41 = arith.constant 0.000000e+00 : f32
    %30 = vector.broadcast %cst_41 : f32 to vector<64x8xf32>
    %31 = arith.maximumf %29, %30 : vector<64x8xf32>
    %cst_42 = arith.constant 0.000000e+00 : f32
    %32 = vector.broadcast %cst_42 : f32 to vector<10x10x8xf32>
    %c0_43 = arith.constant 0 : index
    %c0_44 = arith.constant 0 : index
    %c0_45 = arith.constant 0 : index
    %33 = vector.load %arg8[%c0_43, %c0_44, %c0_45] : memref<10x10x8xf32, #tpu.memory_space<vmem>>, vector<10x10x8xf32>
    tpu.vector_store %arg8[%c0_43, %c0_44, %c0_45], %32 {strides = array<i32>} : memref<10x10x8xf32, #tpu.memory_space<vmem>>, vector<10x10x8xf32>,
    %34 = vector.shape_cast %31 : vector<64x8xf32> to vector<8x8x8xf32>
    %c1_46 = arith.constant 1 : index
    %c1_47 = arith.constant 1 : index
    %c0_48 = arith.constant 0 : index
    %35 = vector.load %arg8[%c1_46, %c1_47, %c0_48] : memref<10x10x8xf32, #tpu.memory_space<vmem>>, vector<8x8x8xf32>
    tpu.vector_store %arg8[%c1_46, %c1_47, %c0_48], %34 {strides = array<i32>} : memref<10x10x8xf32, #tpu.memory_space<vmem>>, vector<8x8x8xf32>,
    %c0_49 = arith.constant 0 : index
    %c0_50 = arith.constant 0 : index
    %c0_51 = arith.constant 0 : index
    %36 = vector.load %arg8[%c0_49, %c0_50, %c0_51] : memref<10x10x8xf32, #tpu.memory_space<vmem>>, vector<8x8x8xf32>
    %37 = vector.shape_cast %36 : vector<8x8x8xf32> to vector<64x8xf32>
    %c0_52 = arith.constant 0 : index
    %c1_53 = arith.constant 1 : index
    %c0_54 = arith.constant 0 : index
    %38 = vector.load %arg8[%c0_52, %c1_53, %c0_54] : memref<10x10x8xf32, #tpu.memory_space<vmem>>, vector<8x8x8xf32>
    %39 = vector.shape_cast %38 : vector<8x8x8xf32> to vector<64x8xf32>
    %c0_55 = arith.constant 0 : index
    %c2_56 = arith.constant 2 : index
    %c0_57 = arith.constant 0 : index
    %40 = vector.load %arg8[%c0_55, %c2_56, %c0_57] : memref<10x10x8xf32, #tpu.memory_space<vmem>>, vector<8x8x8xf32>
    %41 = vector.shape_cast %40 : vector<8x8x8xf32> to vector<64x8xf32>
    %c1_58 = arith.constant 1 : index
    %c0_59 = arith.constant 0 : index
    %c0_60 = arith.constant 0 : index
    %42 = vector.load %arg8[%c1_58, %c0_59, %c0_60] : memref<10x10x8xf32, #tpu.memory_space<vmem>>, vector<8x8x8xf32>
    %43 = vector.shape_cast %42 : vector<8x8x8xf32> to vector<64x8xf32>
    %c1_61 = arith.constant 1 : index
    %c1_62 = arith.constant 1 : index
    %c0_63 = arith.constant 0 : index
    %44 = vector.load %arg8[%c1_61, %c1_62, %c0_63] : memref<10x10x8xf32, #tpu.memory_space<vmem>>, vector<8x8x8xf32>
    %45 = vector.shape_cast %44 : vector<8x8x8xf32> to vector<64x8xf32>
    %c1_64 = arith.constant 1 : index
    %c2_65 = arith.constant 2 : index
    %c0_66 = arith.constant 0 : index
    %46 = vector.load %arg8[%c1_64, %c2_65, %c0_66] : memref<10x10x8xf32, #tpu.memory_space<vmem>>, vector<8x8x8xf32>
    %47 = vector.shape_cast %46 : vector<8x8x8xf32> to vector<64x8xf32>
    %c2_67 = arith.constant 2 : index
    %c0_68 = arith.constant 0 : index
    %c0_69 = arith.constant 0 : index
    %48 = vector.load %arg8[%c2_67, %c0_68, %c0_69] : memref<10x10x8xf32, #tpu.memory_space<vmem>>, vector<8x8x8xf32>
    %49 = vector.shape_cast %48 : vector<8x8x8xf32> to vector<64x8xf32>
    %c2_70 = arith.constant 2 : index
    %c1_71 = arith.constant 1 : index
    %c0_72 = arith.constant 0 : index
    %50 = vector.load %arg8[%c2_70, %c1_71, %c0_72] : memref<10x10x8xf32, #tpu.memory_space<vmem>>, vector<8x8x8xf32>
    %51 = vector.shape_cast %50 : vector<8x8x8xf32> to vector<64x8xf32>
    %c2_73 = arith.constant 2 : index
    %c2_74 = arith.constant 2 : index
    %c0_75 = arith.constant 0 : index
    %52 = vector.load %arg8[%c2_73, %c2_74, %c0_75] : memref<10x10x8xf32, #tpu.memory_space<vmem>>, vector<8x8x8xf32>
    %53 = vector.shape_cast %52 : vector<8x8x8xf32> to vector<64x8xf32>
    %54 = tpu.concatenate %37, %39, %41, %43, %45, %47, %49, %51, %53 in 1 : vector<64x8xf32>, vector<64x8xf32>, vector<64x8xf32>, vector<64x8xf32>, vector<64x8xf32>, vector<64x8xf32>, vector<64x8xf32>, vector<64x8xf32>, vector<64x8xf32> -> vector<64x72xf32>
    %c0_76 = arith.constant 0 : index
    %c0_77 = arith.constant 0 : index
    %55 = vector.load %arg4[%c0_76, %c0_77] : memref<72x8xf32, #tpu.memory_space<vmem>>, vector<72x8xf32>
    %cst_78 = arith.constant dense<0.000000e+00> : vector<64x8xf32>
    %56 = tpu.matmul %54, %55, %cst_78 {dimension_numbers = #tpu.dot_dimension_numbers<[1], [0], [0], [1], [0, 0, 1, 1], [], []>} : vector<64x72xf32>, vector<72x8xf32>, vector<64x8xf32> -> vector<64x8xf32>
    %c0_79 = arith.constant 0 : index
    %c0_80 = arith.constant 0 : index
    %57 = vector.load %arg5[%c0_79, %c0_80] : memref<1x8xf32, #tpu.memory_space<vmem>>, vector<1x8xf32>
    %58 = vector.broadcast %57 : vector<1x8xf32> to vector<64x8xf32>
    %59 = arith.addf %56, %58 : vector<64x8xf32>
    %cst_81 = arith.constant 0.000000e+00 : f32
    %60 = vector.broadcast %cst_81 : f32 to vector<64x8xf32>
    %61 = arith.maximumf %59, %60 : vector<64x8xf32>
    %62 = vector.shape_cast %61 : vector<64x8xf32> to vector<8x8x8xf32>
    %c0_82 = arith.constant 0 : index
    %c0_83 = arith.constant 0 : index
    %c0_84 = arith.constant 0 : index
    %c0_85 = arith.constant 0 : index
    %63 = vector.load %arg6[%c0_82, %c0_83, %c0_84, %c0_85] : memref<1x8x8x8xf32, #tpu.memory_space<vmem>>, vector<1x8x8x8xf32>
    %64 = vector.shape_cast %63 : vector<1x8x8x8xf32> to vector<8x8x8xf32>
    %65 = vector.shape_cast %62 : vector<8x8x8xf32> to vector<1x8x8x8xf32>
    tpu.vector_store %arg6[%c0_82, %c0_83, %c0_84, %c0_85], %65 {strides = array<i32>} : memref<1x8x8x8xf32, #tpu.memory_space<vmem>>, vector<1x8x8x8xf32>,
    return
  }
  func.func @transform_0(%arg0: i32) -> (i32, i32, i32, i32, i32) {
    %c0_i32 = arith.constant 0 : i32
    %c0_i32_0 = arith.constant 0 : i32
    %c0_i32_1 = arith.constant 0 : i32
    %c0_i32_2 = arith.constant 0 : i32
    %c0_i32_3 = arith.constant 0 : i32
    return %arg0, %c0_i32, %c0_i32_0, %c0_i32_1, %c0_i32_2 : i32, i32, i32, i32, i32
  }
  func.func @transform_1(%arg0: i32) -> (i32, i32) {
    %c0_i32 = arith.constant 0 : i32
    %c0_i32_0 = arith.constant 0 : i32
    %c0_i32_1 = arith.constant 0 : i32
    return %c0_i32, %c0_i32_0 : i32, i32
  }
  func.func @transform_2(%arg0: i32) -> (i32, i32) {
    %c0_i32 = arith.constant 0 : i32
    %c0_i32_0 = arith.constant 0 : i32
    %c0_i32_1 = arith.constant 0 : i32
    return %c0_i32, %c0_i32_0 : i32, i32
  }
  func.func @transform_3(%arg0: i32) -> (i32, i32) {
    %c0_i32 = arith.constant 0 : i32
    %c0_i32_0 = arith.constant 0 : i32
    %c0_i32_1 = arith.constant 0 : i32
    return %c0_i32, %c0_i32_0 : i32, i32
  }
  func.func @transform_4(%arg0: i32) -> (i32, i32) {
    %c0_i32 = arith.constant 0 : i32
    %c0_i32_0 = arith.constant 0 : i32
    %c0_i32_1 = arith.constant 0 : i32
    return %c0_i32, %c0_i32_0 : i32, i32
  }
  func.func @transform_5(%arg0: i32) -> (i32, i32, i32, i32) {
    %c0_i32 = arith.constant 0 : i32
    %c0_i32_0 = arith.constant 0 : i32
    %c0_i32_1 = arith.constant 0 : i32
    %c0_i32_2 = arith.constant 0 : i32
    return %arg0, %c0_i32, %c0_i32_0, %c0_i32_1 : i32, i32, i32, i32
  }
}

</mosaic_0001>

<llo_original>
// kernel: tpu_custom_call.1
$region0: #{tpu_custom_call.1}
  #allocation0 [shape = 'u32[]', space=smem, size = 0x4, offset = 0x4, fixed_abs, tag = 'smem constant byte address 0x4 - core index']
  #allocation1 [shape = 'u32[144,128]{1,0:T(1,128)}', space=vmem, size = 0x12000, scoped, tag = 'internal scratch']
  #allocation2 [shape = 'f32[10,10,4]{2,1,0:T(8,128)}', space=vmem, size = 0x14000, scoped, tag = 'scratch operand']
  #allocation3 [shape = 'f32[10,10,8]{2,1,0:T(8,128)}', space=vmem, size = 0x14000, scoped, tag = 'scratch operand']
  %s0 = inlined_call_operand.vmem [shape: f32[2,4,8,8,4], index: 0, kind: input, shape index: {}]
  %s1 = inlined_call_operand.vmem [shape: f32[36,8], index: 1, kind: input, shape index: {}]
  %s2 = inlined_call_operand.vmem [shape: f32[1,8], index: 2, kind: input, shape index: {}]
  %s3 = inlined_call_operand.vmem [shape: f32[72,8], index: 3, kind: input, shape index: {}]
  %s4 = inlined_call_operand.vmem [shape: f32[1,8], index: 4, kind: input, shape index: {}]
  %s5 = inlined_call_operand.hbm [shape: f32[2,8,8,8], index: 5, kind: output, shape index: {}]
  %s6 = sld [smem:[#allocation0]]
  $region53: #{tpu_custom_call.1} parent=0
    _
  %s8 = ssub.s32 1, %s6
  %s9 = scalar_select 0, %s8, %s6
  $region1: #{tpu_custom_call.1} parent=0
    #allocation4 [shape = 'u8[65536]{0}', space=vmem, size = 0x10000, scoped, tag = 'output window, operand 0']
    #allocation5 [shape = 's32[2]{0}', space=sflag, size = 0x8, scoped, tag = 'scoped memory for tpu_custom_call.1']
    %10 = vsyncpa [#allocation5], 0
    %s11 = scalar_lea.sflag [#allocation5], 1
    %12 = vsyncpa %s11, 0
    loop: start=0, step=1, limit=4
    $region2: #{tpu_custom_call.1} parent=1 // loop_pre_header
      _
    $region3: #{tpu_custom_call.1} parent=1 // loop_header
      %s14 = sphi 0, %s18
      %p15 = scmp.ge.s32.totalorder %s14, 4
      %s24 = sphi 0, %s26
      %s27 = sphi 0, %s24
      %s28 = sphi 0, %s27
      %s44 = sphi 0, %s28
      %s48 = sphi 0, %s48
      %s50 = sphi 0, %s48
      %s51 = sphi 0, %s50
      %s65 = sphi 0, %s51
      %s69 = sphi 0, %s69
      %s71 = sphi 0, %s69
      %s72 = sphi 0, %s71
      %s86 = sphi 0, %s72
      %s90 = sphi 0, %s90
      %s92 = sphi 0, %s90
      %s93 = sphi 0, %s92
      %s107 = sphi 0, %s93
      %s111 = sphi 0, %s111
      %s113 = sphi 0, %s111
      %s114 = sphi 0, %s113
      %s128 = sphi 0, %s114
      %s134 = sphi 0, %s136
      %s137 = sphi 0, %s134
      %s138 = sphi 0, %s137
      %s154 = sphi 0, %s138
    $region4: #{tpu_custom_call.1} parent=1 // loop_header_branch
      %17 = sbr.rel (%p15) target = $region8
    $region5: #{tpu_custom_call.1} parent=1 // loop_body
      %s19 = ssub.s32 %s14, 1
      %s20 = ssub.s32 %s14, 2
      %s21 = sadd.s32 %s14, 1
      %s22 = ssub.s32 %s14, %s21
      %p23 = scmp.eq.s32.totalorder %s22, 0
      %s25 = sadd.s32 %s24, 1
      %s26 = scalar_select %p23, %s24, %s25
      %p29 = pneg %p23
      %p30 = scmp.eq.s32.totalorder %s14, 1
      %p31 = por %p29, %p30
      %p32 = scmp.ne.s32.totalorder %s24, %s27
      %p33 = scmp.eq.s32.totalorder %s14, 0
      %p34 = por %p32, %p33
      %p35 = scmp.ne.s32.totalorder %s24, %s27
      %p36 = scmp.eq.s32.totalorder %s19, 1
      %p37 = por %p35, %p36
      %p38 = scmp.ne.s32.totalorder %s27, %s28
      %p39 = scmp.eq.s32.totalorder %s19, 0
      %p40 = por %p38, %p39
      %p41 = scmp.ne.s32.totalorder %s27, %s28
      %p42 = scmp.eq.s32.totalorder %s20, 1
      %p43 = por %p41, %p42
      %p45 = scmp.ne.s32.totalorder %s28, %s44
      %p46 = scmp.eq.s32.totalorder %s20, 0
      %p47 = por %p45, %p46
      %s49 = sadd.s32 %s48, 1
      %p52 = scmp.eq.s32.totalorder %s14, 1
      %p53 = scmp.ne.s32.totalorder %s48, %s50
      %p54 = scmp.eq.s32.totalorder %s14, 0
      %p55 = por %p53, %p54
      %p56 = scmp.ne.s32.totalorder %s48, %s50
      %p57 = scmp.eq.s32.totalorder %s19, 1
      %p58 = por %p56, %p57
      %p59 = scmp.ne.s32.totalorder %s50, %s51
      %p60 = scmp.eq.s32.totalorder %s19, 0
      %p61 = por %p59, %p60
      %p62 = scmp.ne.s32.totalorder %s50, %s51
      %p63 = scmp.eq.s32.totalorder %s20, 1
      %p64 = por %p62, %p63
      %p66 = scmp.ne.s32.totalorder %s51, %s65
      %p67 = scmp.eq.s32.totalorder %s20, 0
      %p68 = por %p66, %p67
      %s70 = sadd.s32 %s69, 1
      %p73 = scmp.eq.s32.totalorder %s14, 1
      %p74 = scmp.ne.s32.totalorder %s69, %s71
      %p75 = scmp.eq.s32.totalorder %s14, 0
      %p76 = por %p74, %p75
      %p77 = scmp.ne.s32.totalorder %s69, %s71
      %p78 = scmp.eq.s32.totalorder %s19, 1
      %p79 = por %p77, %p78
      %p80 = scmp.ne.s32.totalorder %s71, %s72
      %p81 = scmp.eq.s32.totalorder %s19, 0
      %p82 = por %p80, %p81
      %p83 = scmp.ne.s32.totalorder %s71, %s72
      %p84 = scmp.eq.s32.totalorder %s20, 1
      %p85 = por %p83, %p84
      %p87 = scmp.ne.s32.totalorder %s72, %s86
      %p88 = scmp.eq.s32.totalorder %s20, 0
      %p89 = por %p87, %p88
      %s91 = sadd.s32 %s90, 1
      %p94 = scmp.eq.s32.totalorder %s14, 1
      %p95 = scmp.ne.s32.totalorder %s90, %s92
      %p96 = scmp.eq.s32.totalorder %s14, 0
      %p97 = por %p95, %p96
      %p98 = scmp.ne.s32.totalorder %s90, %s92
      %p99 = scmp.eq.s32.totalorder %s19, 1
      %p100 = por %p98, %p99
      %p101 = scmp.ne.s32.totalorder %s92, %s93
      %p102 = scmp.eq.s32.totalorder %s19, 0
      %p103 = por %p101, %p102
      %p104 = scmp.ne.s32.totalorder %s92, %s93
      %p105 = scmp.eq.s32.totalorder %s20, 1
      %p106 = por %p104, %p105
      %p108 = scmp.ne.s32.totalorder %s93, %s107
      %p109 = scmp.eq.s32.totalorder %s20, 0
      %p110 = por %p108, %p109
      %s112 = sadd.s32 %s111, 1
      %p115 = scmp.eq.s32.totalorder %s14, 1
      %p116 = scmp.ne.s32.totalorder %s111, %s113
      %p117 = scmp.eq.s32.totalorder %s14, 0
      %p118 = por %p116, %p117
      %p119 = scmp.ne.s32.totalorder %s111, %s113
      %p120 = scmp.eq.s32.totalorder %s19, 1
      %p121 = por %p119, %p120
      %p122 = scmp.ne.s32.totalorder %s113, %s114
      %p123 = scmp.eq.s32.totalorder %s19, 0
      %p124 = por %p122, %p123
      %p125 = scmp.ne.s32.totalorder %s113, %s114
      %p126 = scmp.eq.s32.totalorder %s20, 1
      %p127 = por %p125, %p126
      %p129 = scmp.ne.s32.totalorder %s114, %s128
      %p130 = scmp.eq.s32.totalorder %s20, 0
      %p131 = por %p129, %p130
      %s132 = ssub.s32 %s14, %s21
      %p133 = scmp.eq.s32.totalorder %s132, 0
      %s135 = sadd.s32 %s134, 1
      %s136 = scalar_select %p133, %s134, %s135
      %p139 = pneg %p133
      %p140 = scmp.eq.s32.totalorder %s14, 1
      %p141 = por %p139, %p140
      %p142 = scmp.ne.s32.totalorder %s134, %s137
      %p143 = scmp.eq.s32.totalorder %s14, 0
      %p144 = por %p142, %p143
      %p145 = scmp.ne.s32.totalorder %s134, %s137
      %p146 = scmp.eq.s32.totalorder %s19, 1
      %p147 = por %p145, %p146
      %p148 = scmp.ne.s32.totalorder %s137, %s138
      %p149 = scmp.eq.s32.totalorder %s19, 0
      %p150 = por %p148, %p149
      %p151 = scmp.ne.s32.totalorder %s137, %s138
      %p152 = scmp.eq.s32.totalorder %s20, 1
      %p153 = por %p151, %p152
      %p155 = scmp.ne.s32.totalorder %s138, %s154
      %p156 = scmp.eq.s32.totalorder %s20, 0
      %p157 = por %p155, %p156
      %p158 = scmp.le.s32.totalorder 1, %s14
      %p159 = scmp.lt.s32.totalorder %s14, 3
      %p160 = pnand %p158, %p159
      %p161 = pneg %p160
      // Predicated region
      $region9: #{tpu_custom_call.1} parent=5 // pred_check
        _
      $region10: #{tpu_custom_call.1} parent=5 // pred_check_branch
        %163 = sbr.rel (%p160) target = $region12
      $region11: #{tpu_custom_call.1} parent=5 // pred_region
        %s164 = ssub.s32 %s14, 1
        // Predicated region
        $region13: #{tpu_custom_call.1} parent=11 // pred_check
          %p165 = pneg %p61
        $region14: #{tpu_custom_call.1} parent=11 // pred_check_branch
          %167 = sbr.rel (%p165) target = $region16
        $region15: #{tpu_custom_call.1} parent=11 // pred_region
          _
        $region16: #{tpu_custom_call.1} parent=11 // pred_fallthru
          _
        // Predicated region
        $region17: #{tpu_custom_call.1} parent=11 // pred_check
          %p168 = pneg %p82
        $region18: #{tpu_custom_call.1} parent=11 // pred_check_branch
          %170 = sbr.rel (%p168) target = $region20
        $region19: #{tpu_custom_call.1} parent=11 // pred_region
          _
        $region20: #{tpu_custom_call.1} parent=11 // pred_fallthru
          _
        // Predicated region
        $region21: #{tpu_custom_call.1} parent=11 // pred_check
          %p171 = pneg %p103
        $region22: #{tpu_custom_call.1} parent=11 // pred_check_branch
          %173 = sbr.rel (%p171) target = $region24
        $region23: #{tpu_custom_call.1} parent=11 // pred_region
          _
        $region24: #{tpu_custom_call.1} parent=11 // pred_fallthru
          _
        // Predicated region
        $region25: #{tpu_custom_call.1} parent=11 // pred_check
          %p174 = pneg %p124
        $region26: #{tpu_custom_call.1} parent=11 // pred_check_branch
          %176 = sbr.rel (%p174) target = $region28
        $region27: #{tpu_custom_call.1} parent=11 // pred_region
          _
        $region28: #{tpu_custom_call.1} parent=11 // pred_fallthru
          _
      $region12: #{tpu_custom_call.1} parent=5 // pred_fallthru
        _
      %p177 = scmp.lt.s32.totalorder %s14, 2
      // Predicated region
      $region29: #{tpu_custom_call.1} parent=5 // pred_check
        %p178 = pneg %p177
      $region30: #{tpu_custom_call.1} parent=5 // pred_check_branch
        %180 = sbr.rel (%p178) target = $region32
      $region31: #{tpu_custom_call.1} parent=5 // pred_region
        // Predicated region
        $region33: #{tpu_custom_call.1} parent=31 // pred_check
          %p181 = pneg %p34
        $region34: #{tpu_custom_call.1} parent=31 // pred_check_branch
          %183 = sbr.rel (%p181) target = $region36
        $region35: #{tpu_custom_call.1} parent=31 // pred_region
          %p184 = scmp.lt.s32.totalorder %s14, 1
          %s185 = scalar_select %p184, %s14, 1
          %s186 = smul.addr %s185, 32
          %s187 = smul.addr %s186, 8
          %s188 = scalar_lea.vmem %s0, %s187
        $region36: #{tpu_custom_call.1} parent=31 // pred_fallthru
          _
      $region32: #{tpu_custom_call.1} parent=5 // pred_fallthru
        _
      %p189 = scmp.le.s32.totalorder 1, %s14
      %p190 = scmp.lt.s32.totalorder %s14, 3
      %p191 = pnand %p189, %p190
      %p192 = pneg %p191
      // Predicated region
      $region37: #{tpu_custom_call.1} parent=5 // pred_check
        _
      $region38: #{tpu_custom_call.1} parent=5 // pred_check_branch
        %194 = sbr.rel (%p191) target = $region40
      $region39: #{tpu_custom_call.1} parent=5 // pred_region
        %s195 = ssub.s32 %s14, 1
        %p196 = scmp.lt.s32.totalorder %s19, 1
        %s197 = scalar_select %p196, %s19, 1
        %s198 = smul.addr %s197, 32
        %s199 = smul.addr %s198, 8
        %s200 = scalar_lea.vmem %s0, %s199
        %p201 = pneg %p40
        %p202 = pneg %p37
        %p203 = pneg %p61
        %p204 = pneg %p58
        %p205 = pneg %p82
        %p206 = pneg %p79
        %p207 = pneg %p103
        %p208 = pneg %p100
        %p209 = pneg %p124
        %p210 = pneg %p121
        %p211 = pneg %p150
        %p212 = pneg %p147
        %s213 = sand.u32 %s137, 1
        %s214 = scalar_lea.sflag [#allocation5], %s213
        %s215 = sand.u32 %s137, 1
        %s216 = smul.addr %s215, 64
        %s217 = scalar_lea.vmem [#allocation4], %s216
        %p218 = scmp.lt.s32.totalorder %s19, 1
        %s219 = scalar_select %p218, %s19, 1
        %s220 = smul.addr %s219, 32
        %s221 = smul.addr %s220, 8
        %s222 = scalar_lea.vmem %s0, %s221
        %v223 = vld [vmem:[%s222] sm:$0xff]
        %v224 = vld [vmem:[%s222 + $0x8] sm:$0xff]
        %v225 = vld [vmem:[%s222 + $0x10] sm:$0xff]
        %v226 = vld [vmem:[%s222 + $0x18] sm:$0xff]
        %v227 = vld [vmem:[%s222 + $0x20] sm:$0xff]
        %v228 = vld [vmem:[%s222 + $0x28] sm:$0xff]
        %v229 = vld [vmem:[%s222 + $0x30] sm:$0xff]
        %v230 = vld [vmem:[%s222 + $0x38] sm:$0xff]
        %v231 = vld [vmem:[%s222 + $0x40] sm:$0xff]
        %v232 = vld [vmem:[%s222 + $0x48] sm:$0xff]
        %v233 = vld [vmem:[%s222 + $0x50] sm:$0xff]
        %v234 = vld [vmem:[%s222 + $0x58] sm:$0xff]
        %v235 = vld [vmem:[%s222 + $0x60] sm:$0xff]
        %v236 = vld [vmem:[%s222 + $0x68] sm:$0xff]
        %v237 = vld [vmem:[%s222 + $0x70] sm:$0xff]
        %v238 = vld [vmem:[%s222 + $0x78] sm:$0xff]
        %v239 = vld [vmem:[%s222 + $0x80] sm:$0xff]
        %v240 = vld [vmem:[%s222 + $0x88] sm:$0xff]
        %v241 = vld [vmem:[%s222 + $0x90] sm:$0xff]
        %v242 = vld [vmem:[%s222 + $0x98] sm:$0xff]
        %v243 = vld [vmem:[%s222 + $0xa0] sm:$0xff]
        %v244 = vld [vmem:[%s222 + $0xa8] sm:$0xff]
        %v245 = vld [vmem:[%s222 + $0xb0] sm:$0xff]
        %v246 = vld [vmem:[%s222 + $0xb8] sm:$0xff]
        %v247 = vld [vmem:[%s222 + $0xc0] sm:$0xff]
        %v248 = vld [vmem:[%s222 + $0xc8] sm:$0xff]
        %v249 = vld [vmem:[%s222 + $0xd0] sm:$0xff]
        %v250 = vld [vmem:[%s222 + $0xd8] sm:$0xff]
        %v251 = vld [vmem:[%s222 + $0xe0] sm:$0xff]
        %v252 = vld [vmem:[%s222 + $0xe8] sm:$0xff]
        %v253 = vld [vmem:[%s222 + $0xf0] sm:$0xff]
        %v254 = vld [vmem:[%s222 + $0xf8] sm:$0xff]
        %vm255 = vcmask 31744
        %v256 = vsel %vm255, %v223, -inf
        %v257 = vsel %vm255, %v231, -inf
        %v258 = vmax.f32 %v256, %v257
        %v259 = vsel %vm255, %v239, -inf
        %v260 = vmax.f32 %v258, %v259
        %v261 = vsel %vm255, %v247, -inf
        %v262 = vmax.f32 %v260, %v261
        %v263 = vsel %vm255, %v224, -inf
        %v264 = vsel %vm255, %v232, -inf
        %v265 = vmax.f32 %v263, %v264
        %v266 = vsel %vm255, %v240, -inf
        %v267 = vmax.f32 %v265, %v266
        %v268 = vsel %vm255, %v248, -inf
        %v269 = vmax.f32 %v267, %v268
        %v270 = vsel %vm255, %v225, -inf
        %v271 = vsel %vm255, %v233, -inf
        %v272 = vmax.f32 %v270, %v271
        %v273 = vsel %vm255, %v241, -inf
        %v274 = vmax.f32 %v272, %v273
        %v275 = vsel %vm255, %v249, -inf
        %v276 = vmax.f32 %v274, %v275
        %v277 = vsel %vm255, %v226, -inf
        %v278 = vsel %vm255, %v234, -inf
        %v279 = vmax.f32 %v277, %v278
        %v280 = vsel %vm255, %v242, -inf
        %v281 = vmax.f32 %v279, %v280
        %v282 = vsel %vm255, %v250, -inf
        %v283 = vmax.f32 %v281, %v282
        %v284 = vsel %vm255, %v227, -inf
        %v285 = vsel %vm255, %v235, -inf
        %v286 = vmax.f32 %v284, %v285
        %v287 = vsel %vm255, %v243, -inf
        %v288 = vmax.f32 %v286, %v287
        %v289 = vsel %vm255, %v251, -inf
        %v290 = vmax.f32 %v288, %v289
        %v291 = vsel %vm255, %v228, -inf
        %v292 = vsel %vm255, %v236, -inf
        %v293 = vmax.f32 %v291, %v292
        %v294 = vsel %vm255, %v244, -inf
        %v295 = vmax.f32 %v293, %v294
        %v296 = vsel %vm255, %v252, -inf
        %v297 = vmax.f32 %v295, %v296
        %v298 = vsel %vm255, %v229, -inf
        %v299 = vsel %vm255, %v237, -inf
        %v300 = vmax.f32 %v298, %v299
        %v301 = vsel %vm255, %v245, -inf
        %v302 = vmax.f32 %v300, %v301
        %v303 = vsel %vm255, %v253, -inf
        %v304 = vmax.f32 %v302, %v303
        %v305 = vsel %vm255, %v230, -inf
        %v306 = vsel %vm255, %v238, -inf
        %v307 = vmax.f32 %v305, %v306
        %v308 = vsel %vm255, %v246, -inf
        %v309 = vmax.f32 %v307, %v308
        %v310 = vsel %vm255, %v254, -inf
        %v311 = vmax.f32 %v309, %v310
        %312 = vst.msk [vmem:[#allocation2] sm:$0xff] %vm255, 0.0
        %vm313 = vcmask 25600
        %314 = vst.msk [vmem:[#allocation2 + $0x8] sm:$0x3] %vm313, 0.0
        %315 = vst.msk [vmem:[#allocation2 + $0x10] sm:$0xff] %vm255, 0.0
        %316 = vst.msk [vmem:[#allocation2 + $0x18] sm:$0x3] %vm313, 0.0
        %317 = vst.msk [vmem:[#allocation2 + $0x20] sm:$0xff] %vm255, 0.0
        %318 = vst.msk [vmem:[#allocation2 + $0x28] sm:$0x3] %vm313, 0.0
        %319 = vst.msk [vmem:[#allocation2 + $0x30] sm:$0xff] %vm255, 0.0
        %320 = vst.msk [vmem:[#allocation2 + $0x38] sm:$0x3] %vm313, 0.0
        %321 = vst.msk [vmem:[#allocation2 + $0x40] sm:$0xff] %vm255, 0.0
        %322 = vst.msk [vmem:[#allocation2 + $0x48] sm:$0x3] %vm313, 0.0
        %323 = vst.msk [vmem:[#allocation2 + $0x50] sm:$0xff] %vm255, 0.0
        %324 = vst.msk [vmem:[#allocation2 + $0x58] sm:$0x3] %vm313, 0.0
        %325 = vst.msk [vmem:[#allocation2 + $0x60] sm:$0xff] %vm255, 0.0
        %326 = vst.msk [vmem:[#allocation2 + $0x68] sm:$0x3] %vm313, 0.0
        %327 = vst.msk [vmem:[#allocation2 + $0x70] sm:$0xff] %vm255, 0.0
        %328 = vst.msk [vmem:[#allocation2 + $0x78] sm:$0x3] %vm313, 0.0
        %329 = vst.msk [vmem:[#allocation2 + $0x80] sm:$0xff] %vm255, 0.0
        %330 = vst.msk [vmem:[#allocation2 + $0x88] sm:$0x3] %vm313, 0.0
        %331 = vst.msk [vmem:[#allocation2 + $0x90] sm:$0xff] %vm255, 0.0
        %332 = vst.msk [vmem:[#allocation2 + $0x98] sm:$0x3] %vm313, 0.0
        %s333 = scalar_lea.vmem [#allocation2], 16
        %334 = vst.msk [vmem:[%s333 + $0x1] sm:$0xff] %vm255, %v262
        %335 = vst.msk [vmem:[%s333 + $0x11] sm:$0xff] %vm255, %v269
        %336 = vst.msk [vmem:[%s333 + $0x21] sm:$0xff] %vm255, %v276
        %337 = vst.msk [vmem:[%s333 + $0x31] sm:$0xff] %vm255, %v283
        %338 = vst.msk [vmem:[%s333 + $0x41] sm:$0xff] %vm255, %v290
        %339 = vst.msk [vmem:[%s333 + $0x51] sm:$0xff] %vm255, %v297
        %340 = vst.msk [vmem:[%s333 + $0x61] sm:$0xff] %vm255, %v304
        %341 = vst.msk [vmem:[%s333 + $0x71] sm:$0xff] %vm255, %v311
        %v342 = vld [vmem:[#allocation2] sm:$0xff]
        %v343 = vld [vmem:[#allocation2 + $0x10] sm:$0xff]
        %v344 = vld [vmem:[#allocation2 + $0x20] sm:$0xff]
        %v345 = vld [vmem:[#allocation2 + $0x30] sm:$0xff]
        %v346 = vld [vmem:[#allocation2 + $0x40] sm:$0xff]
        %v347 = vld [vmem:[#allocation2 + $0x50] sm:$0xff]
        %v348 = vld [vmem:[#allocation2 + $0x60] sm:$0xff]
        %v349 = vld [vmem:[#allocation2 + $0x70] sm:$0xff]
        %v350 = vld [vmem:[#allocation2 + $0x1] sm:$0xff]
        %v351 = vld [vmem:[#allocation2 + $0x11] sm:$0xff]
        %v352 = vld [vmem:[#allocation2 + $0x21] sm:$0xff]
        %v353 = vld [vmem:[#allocation2 + $0x31] sm:$0xff]
        %v354 = vld [vmem:[#allocation2 + $0x41] sm:$0xff]
        %v355 = vld [vmem:[#allocation2 + $0x51] sm:$0xff]
        %v356 = vld [vmem:[#allocation2 + $0x61] sm:$0xff]
        %v357 = vld [vmem:[#allocation2 + $0x71] sm:$0xff]
        %v358 = vld [vmem:[#allocation2 + $0x2] sm:$0xff]
        %v359 = vld [vmem:[#allocation2 + $0x12] sm:$0xff]
        %v360 = vld [vmem:[#allocation2 + $0x22] sm:$0xff]
        %v361 = vld [vmem:[#allocation2 + $0x32] sm:$0xff]
        %v362 = vld [vmem:[#allocation2 + $0x42] sm:$0xff]
        %v363 = vld [vmem:[#allocation2 + $0x52] sm:$0xff]
        %v364 = vld [vmem:[#allocation2 + $0x62] sm:$0xff]
        %v365 = vld [vmem:[#allocation2 + $0x72] sm:$0xff]
        %v366 = vld [vmem:[%s333] sm:$0xff]
        %v367 = vld [vmem:[%s333 + $0x10] sm:$0xff]
        %v368 = vld [vmem:[%s333 + $0x20] sm:$0xff]
        %v369 = vld [vmem:[%s333 + $0x30] sm:$0xff]
        %v370 = vld [vmem:[%s333 + $0x40] sm:$0xff]
        %v371 = vld [vmem:[%s333 + $0x50] sm:$0xff]
        %v372 = vld [vmem:[%s333 + $0x60] sm:$0xff]
        %v373 = vld [vmem:[%s333 + $0x70] sm:$0xff]
        %v374 = vld [vmem:[%s333 + $0x1] sm:$0xff]
        %v375 = vld [vmem:[%s333 + $0x11] sm:$0xff]
        %v376 = vld [vmem:[%s333 + $0x21] sm:$0xff]
        %v377 = vld [vmem:[%s333 + $0x31] sm:$0xff]
        %v378 = vld [vmem:[%s333 + $0x41] sm:$0xff]
        %v379 = vld [vmem:[%s333 + $0x51] sm:$0xff]
        %v380 = vld [vmem:[%s333 + $0x61] sm:$0xff]
        %v381 = vld [vmem:[%s333 + $0x71] sm:$0xff]
        %v382 = vld [vmem:[%s333 + $0x2] sm:$0xff]
        %v383 = vld [vmem:[%s333 + $0x12] sm:$0xff]
        %v384 = vld [vmem:[%s333 + $0x22] sm:$0xff]
        %v385 = vld [vmem:[%s333 + $0x32] sm:$0xff]
        %v386 = vld [vmem:[%s333 + $0x42] sm:$0xff]
        %v387 = vld [vmem:[%s333 + $0x52] sm:$0xff]
        %v388 = vld [vmem:[%s333 + $0x62] sm:$0xff]
        %v389 = vld [vmem:[%s333 + $0x72] sm:$0xff]
        %s390 = scalar_lea.vmem [#allocation2], 32
        %v391 = vld [vmem:[%s390] sm:$0xff]
        %v392 = vld [vmem:[%s390 + $0x10] sm:$0xff]
        %v393 = vld [vmem:[%s390 + $0x20] sm:$0xff]
        %v394 = vld [vmem:[%s390 + $0x30] sm:$0xff]
        %v395 = vld [vmem:[%s390 + $0x40] sm:$0xff]
        %v396 = vld [vmem:[%s390 + $0x50] sm:$0xff]
        %v397 = vld [vmem:[%s390 + $0x60] sm:$0xff]
        %v398 = vld [vmem:[%s390 + $0x70] sm:$0xff]
        %v399 = vld [vmem:[%s390 + $0x1] sm:$0xff]
        %v400 = vld [vmem:[%s390 + $0x11] sm:$0xff]
        %v401 = vld [vmem:[%s390 + $0x21] sm:$0xff]
        %v402 = vld [vmem:[%s390 + $0x31] sm:$0xff]
        %v403 = vld [vmem:[%s390 + $0x41] sm:$0xff]
        %v404 = vld [vmem:[%s390 + $0x51] sm:$0xff]
        %v405 = vld [vmem:[%s390 + $0x61] sm:$0xff]
        %v406 = vld [vmem:[%s390 + $0x71] sm:$0xff]
        %v407 = vld [vmem:[%s390 + $0x2] sm:$0xff]
        %v408 = vld [vmem:[%s390 + $0x12] sm:$0xff]
        %v409 = vld [vmem:[%s390 + $0x22] sm:$0xff]
        %v410 = vld [vmem:[%s390 + $0x32] sm:$0xff]
        %v411 = vld [vmem:[%s390 + $0x42] sm:$0xff]
        %v412 = vld [vmem:[%s390 + $0x52] sm:$0xff]
        %v413 = vld [vmem:[%s390 + $0x62] sm:$0xff]
        %v414 = vld [vmem:[%s390 + $0x72] sm:$0xff]
        %423 = vrot.lane.b32.xlu0 %v350, 4
        %v424 = vpop.permute.xlu0 %423
        %425 = vrot.lane.b32.xlu0 %v351, 4
        %v426 = vpop.permute.xlu0 %425
        %427 = vrot.lane.b32.xlu0 %v352, 4
        %v428 = vpop.permute.xlu0 %427
        %429 = vrot.lane.b32.xlu0 %v353, 4
        %v430 = vpop.permute.xlu0 %429
        %431 = vrot.lane.b32.xlu0 %v354, 4
        %v432 = vpop.permute.xlu0 %431
        %433 = vrot.lane.b32.xlu0 %v355, 4
        %v434 = vpop.permute.xlu0 %433
        %435 = vrot.lane.b32.xlu0 %v356, 4
        %v436 = vpop.permute.xlu0 %435
        %437 = vrot.lane.b32.xlu0 %v357, 4
        %v438 = vpop.permute.xlu0 %437
        %455 = vrot.lane.b32.xlu0 %v358, 8
        %v456 = vpop.permute.xlu0 %455
        %457 = vrot.lane.b32.xlu0 %v359, 8
        %v458 = vpop.permute.xlu0 %457
        %459 = vrot.lane.b32.xlu0 %v360, 8
        %v460 = vpop.permute.xlu0 %459
        %461 = vrot.lane.b32.xlu0 %v361, 8
        %v462 = vpop.permute.xlu0 %461
        %463 = vrot.lane.b32.xlu0 %v362, 8
        %v464 = vpop.permute.xlu0 %463
        %465 = vrot.lane.b32.xlu0 %v363, 8
        %v466 = vpop.permute.xlu0 %465
        %467 = vrot.lane.b32.xlu0 %v364, 8
        %v468 = vpop.permute.xlu0 %467
        %469 = vrot.lane.b32.xlu0 %v365, 8
        %v470 = vpop.permute.xlu0 %469
        %487 = vrot.lane.b32.xlu0 %v366, 12
        %v488 = vpop.permute.xlu0 %487
        %489 = vrot.lane.b32.xlu0 %v367, 12
        %v490 = vpop.permute.xlu0 %489
        %491 = vrot.lane.b32.xlu0 %v368, 12
        %v492 = vpop.permute.xlu0 %491
        %493 = vrot.lane.b32.xlu0 %v369, 12
        %v494 = vpop.permute.xlu0 %493
        %495 = vrot.lane.b32.xlu0 %v370, 12
        %v496 = vpop.permute.xlu0 %495
        %497 = vrot.lane.b32.xlu0 %v371, 12
        %v498 = vpop.permute.xlu0 %497
        %499 = vrot.lane.b32.xlu0 %v372, 12
        %v500 = vpop.permute.xlu0 %499
        %501 = vrot.lane.b32.xlu0 %v373, 12
        %v502 = vpop.permute.xlu0 %501
        %519 = vrot.lane.b32.xlu0 %v374, 16
        %v520 = vpop.permute.xlu0 %519
        %521 = vrot.lane.b32.xlu0 %v375, 16
        %v522 = vpop.permute.xlu0 %521
        %523 = vrot.lane.b32.xlu0 %v376, 16
        %v524 = vpop.permute.xlu0 %523
        %525 = vrot.lane.b32.xlu0 %v377, 16
        %v526 = vpop.permute.xlu0 %525
        %527 = vrot.lane.b32.xlu0 %v378, 16
        %v528 = vpop.permute.xlu0 %527
        %529 = vrot.lane.b32.xlu0 %v379, 16
        %v530 = vpop.permute.xlu0 %529
        %531 = vrot.lane.b32.xlu0 %v380, 16
        %v532 = vpop.permute.xlu0 %531
        %533 = vrot.lane.b32.xlu0 %v381, 16
        %v534 = vpop.permute.xlu0 %533
        %551 = vrot.lane.b32.xlu0 %v382, 20
        %v552 = vpop.permute.xlu0 %551
        %553 = vrot.lane.b32.xlu0 %v383, 20
        %v554 = vpop.permute.xlu0 %553
        %555 = vrot.lane.b32.xlu0 %v384, 20
        %v556 = vpop.permute.xlu0 %555
        %557 = vrot.lane.b32.xlu0 %v385, 20
        %v558 = vpop.permute.xlu0 %557
        %559 = vrot.lane.b32.xlu0 %v386, 20
        %v560 = vpop.permute.xlu0 %559
        %561 = vrot.lane.b32.xlu0 %v387, 20
        %v562 = vpop.permute.xlu0 %561
        %563 = vrot.lane.b32.xlu0 %v388, 20
        %v564 = vpop.permute.xlu0 %563
        %565 = vrot.lane.b32.xlu0 %v389, 20
        %v566 = vpop.permute.xlu0 %565
        %583 = vrot.lane.b32.xlu0 %v391, 24
        %v584 = vpop.permute.xlu0 %583
        %585 = vrot.lane.b32.xlu0 %v392, 24
        %v586 = vpop.permute.xlu0 %585
        %587 = vrot.lane.b32.xlu0 %v393, 24
        %v588 = vpop.permute.xlu0 %587
        %589 = vrot.lane.b32.xlu0 %v394, 24
        %v590 = vpop.permute.xlu0 %589
        %591 = vrot.lane.b32.xlu0 %v395, 24
        %v592 = vpop.permute.xlu0 %591
        %593 = vrot.lane.b32.xlu0 %v396, 24
        %v594 = vpop.permute.xlu0 %593
        %595 = vrot.lane.b32.xlu0 %v397, 24
        %v596 = vpop.permute.xlu0 %595
        %597 = vrot.lane.b32.xlu0 %v398, 24
        %v598 = vpop.permute.xlu0 %597
        %615 = vrot.lane.b32.xlu0 %v399, 28
        %v616 = vpop.permute.xlu0 %615
        %617 = vrot.lane.b32.xlu0 %v400, 28
        %v618 = vpop.permute.xlu0 %617
        %619 = vrot.lane.b32.xlu0 %v401, 28
        %v620 = vpop.permute.xlu0 %619
        %621 = vrot.lane.b32.xlu0 %v402, 28
        %v622 = vpop.permute.xlu0 %621
        %623 = vrot.lane.b32.xlu0 %v403, 28
        %v624 = vpop.permute.xlu0 %623
        %625 = vrot.lane.b32.xlu0 %v404, 28
        %v626 = vpop.permute.xlu0 %625
        %627 = vrot.lane.b32.xlu0 %v405, 28
        %v628 = vpop.permute.xlu0 %627
        %629 = vrot.lane.b32.xlu0 %v406, 28
        %v630 = vpop.permute.xlu0 %629
        %647 = vrot.lane.b32.xlu0 %v407, 32
        %v648 = vpop.permute.xlu0 %647
        %649 = vrot.lane.b32.xlu0 %v408, 32
        %v650 = vpop.permute.xlu0 %649
        %651 = vrot.lane.b32.xlu0 %v409, 32
        %v652 = vpop.permute.xlu0 %651
        %653 = vrot.lane.b32.xlu0 %v410, 32
        %v654 = vpop.permute.xlu0 %653
        %655 = vrot.lane.b32.xlu0 %v411, 32
        %v656 = vpop.permute.xlu0 %655
        %657 = vrot.lane.b32.xlu0 %v412, 32
        %v658 = vpop.permute.xlu0 %657
        %659 = vrot.lane.b32.xlu0 %v413, 32
        %v660 = vpop.permute.xlu0 %659
        %661 = vrot.lane.b32.xlu0 %v414, 32
        %v662 = vpop.permute.xlu0 %661
        %v671 = vsel %vm255, %v342, %v424
        %v672 = vsel %vm255, %v343, %v426
        %v673 = vsel %vm255, %v344, %v428
        %v674 = vsel %vm255, %v345, %v430
        %v675 = vsel %vm255, %v346, %v432
        %v676 = vsel %vm255, %v347, %v434
        %v677 = vsel %vm255, %v348, %v436
        %v678 = vsel %vm255, %v349, %v438
        %vm679 = vcmask 64512
        %v680 = vsel %vm679, %v671, %v456
        %v681 = vsel %vm679, %v672, %v458
        %v682 = vsel %vm679, %v673, %v460
        %v683 = vsel %vm679, %v674, %v462
        %v684 = vsel %vm679, %v675, %v464
        %v685 = vsel %vm679, %v676, %v466
        %v686 = vsel %vm679, %v677, %v468
        %v687 = vsel %vm679, %v678, %v470
        %vm688 = vcmask 97280
        %v689 = vsel %vm688, %v680, %v488
        %v690 = vsel %vm688, %v681, %v490
        %v691 = vsel %vm688, %v682, %v492
        %v692 = vsel %vm688, %v683, %v494
        %v693 = vsel %vm688, %v684, %v496
        %v694 = vsel %vm688, %v685, %v498
        %v695 = vsel %vm688, %v686, %v500
        %v696 = vsel %vm688, %v687, %v502
        %vm697 = vcmask 130048
        %v698 = vsel %vm697, %v689, %v520
        %v699 = vsel %vm697, %v690, %v522
        %v700 = vsel %vm697, %v691, %v524
        %v701 = vsel %vm697, %v692, %v526
        %v702 = vsel %vm697, %v693, %v528
        %v703 = vsel %vm697, %v694, %v530
        %v704 = vsel %vm697, %v695, %v532
        %v705 = vsel %vm697, %v696, %v534
        %vm706 = vcmask 162816
        %v707 = vsel %vm706, %v698, %v552
        %v708 = vsel %vm706, %v699, %v554
        %v709 = vsel %vm706, %v700, %v556
        %v710 = vsel %vm706, %v701, %v558
        %v711 = vsel %vm706, %v702, %v560
        %v712 = vsel %vm706, %v703, %v562
        %v713 = vsel %vm706, %v704, %v564
        %v714 = vsel %vm706, %v705, %v566
        %vm715 = vcmask 195584
        %v716 = vsel %vm715, %v707, %v584
        %v717 = vsel %vm715, %v708, %v586
        %v718 = vsel %vm715, %v709, %v588
        %v719 = vsel %vm715, %v710, %v590
        %v720 = vsel %vm715, %v711, %v592
        %v721 = vsel %vm715, %v712, %v594
        %v722 = vsel %vm715, %v713, %v596
        %v723 = vsel %vm715, %v714, %v598
        %vm724 = vcmask 228352
        %v725 = vsel %vm724, %v716, %v616
        %v726 = vsel %vm724, %v717, %v618
        %v727 = vsel %vm724, %v718, %v620
        %v728 = vsel %vm724, %v719, %v622
        %v729 = vsel %vm724, %v720, %v624
        %v730 = vsel %vm724, %v721, %v626
        %v731 = vsel %vm724, %v722, %v628
        %v732 = vsel %vm724, %v723, %v630
        %vm733 = vcmask 261120
        %v734 = vsel %vm733, %v725, %v648
        %v735 = vsel %vm733, %v726, %v650
        %v736 = vsel %vm733, %v727, %v652
        %v737 = vsel %vm733, %v728, %v654
        %v738 = vsel %vm733, %v729, %v656
        %v739 = vsel %vm733, %v730, %v658
        %v740 = vsel %vm733, %v731, %v660
        %v741 = vsel %vm733, %v732, %v662
        %v742 = vld [vmem:[%s1] sm:$0xff]
        %v743 = vld [vmem:[%s1 + $0x8] sm:$0xff]
        %v744 = vld [vmem:[%s1 + $0x10] sm:$0xff]
        %v745 = vld [vmem:[%s1 + $0x18] sm:$0xff]
        %v746 = vld [vmem:[%s1 + $0x20] sm:$0xf]
        %v747 = vld [vmem:[%s2] sm:$0x1]
        %v749 = vlaneseq
        %v750 = vshrl.u32 %v749, 7
        %v751 = vsub.s32 0, %v750
        %v752 = vrot.slane %v747, %v751
        %vm754 = vcmask 293888
        %v756 = vsel %vm754, %v734, 0
        %v759 = vsel %vm754, %v735, 0
        %v762 = vsel %vm754, %v736, 0
        %v765 = vsel %vm754, %v737, 0
        %v768 = vsel %vm754, %v738, 0
        %v771 = vsel %vm754, %v739, 0
        %v774 = vsel %vm754, %v740, 0
        %v777 = vsel %vm754, %v741, 0
        %vm779 = vcmask 1043456
        %v781 = vsel %vm779, %v746, 0
        %783 = vmatprep.subr.mxu0 0.0
        %784 = vmatpush1.msra.mxu0 0.0
        %785 = vmatprep.subr.mxu0 0.0
        %786 = vmatpush1.msra.mxu0 0.0
        %787 = vmatprep.subr.mxu0 0.0
        %788 = vmatpush1.msra.mxu0 0.0
        %789 = vmatprep.subr.mxu0 0.0
        %790 = vmatpush1.msra.mxu0 0.0
        %791 = vmatprep.subr.mxu0 0.0
        %792 = vmatpush1.msra.mxu0 0.0
        %793 = vmatprep.subr.mxu0 0.0
        %794 = vmatpush1.msra.mxu0 0.0
        %795 = vmatprep.subr.mxu0 0.0
        %796 = vmatpush1.msra.mxu0 0.0
        %797 = vmatprep.subr.mxu0 0.0
        %798 = vmatpush1.msra.mxu0 0.0
        %799 = vmatprep.subr.mxu0 0.0
        %800 = vmatpush1.msra.mxu0 0.0
        %801 = vmatprep.subr.mxu0 0.0
        %802 = vmatpush1.msra.mxu0 0.0
        %803 = vmatprep.subr.mxu0 0.0
        %804 = vmatpush1.msra.mxu0 0.0
        %805 = vmatprep.subr.mxu0 0.0
        %806 = vmatpush1.msra.mxu0 %v781
        %807 = vmatprep.subr.mxu0 0.0
        %808 = vmatpush1.msra.mxu0 %v745
        %809 = vmatprep.subr.mxu0 0.0
        %810 = vmatpush1.msra.mxu0 %v744
        %811 = vmatprep.subr.mxu0 0.0
        %812 = vmatpush1.msra.mxu0 %v743
        %813 = vmatprep.subr.mxu0 0.0
        %814 = vmatpush1.msra.mxu0 %v742
        %815 = vmatprep.subr.mxu0 0.0
        %816 = vmatpush2.msra.mxu0 0.0
        %817 = vmatprep.subr.mxu0 0.0
        %818 = vmatpush2.msra.mxu0 0.0
        %819 = vmatprep.subr.mxu0 0.0
        %820 = vmatpush2.msra.mxu0 0.0
        %821 = vmatprep.subr.mxu0 0.0
        %822 = vmatpush2.msra.mxu0 0.0
        %823 = vmatprep.subr.mxu0 0.0
        %824 = vmatpush2.msra.mxu0 0.0
        %825 = vmatprep.subr.mxu0 0.0
        %826 = vmatpush2.msra.mxu0 0.0
        %827 = vmatprep.subr.mxu0 0.0
        %828 = vmatpush2.msra.mxu0 0.0
        %829 = vmatprep.subr.mxu0 0.0
        %830 = vmatpush2.msra.mxu0 0.0
        %831 = vmatprep.subr.mxu0 0.0
        %832 = vmatpush2.msra.mxu0 0.0
        %833 = vmatprep.subr.mxu0 0.0
        %834 = vmatpush2.msra.mxu0 0.0
        %835 = vmatprep.subr.mxu0 0.0
        %836 = vmatpush2.msra.mxu0 0.0
        %837 = vmatprep.subr.mxu0 0.0
        %838 = vmatpush2.msra.mxu0 0.0
        %839 = vmatprep.subr.mxu0 0.0
        %840 = vmatpush2.msra.mxu0 0.0
        %841 = vmatprep.subr.mxu0 0.0
        %842 = vmatpush2.msra.mxu0 0.0
        %843 = vmatprep.subr.mxu0 0.0
        %844 = vmatpush2.msra.mxu0 0.0
        %845 = vmatprep.subr.mxu0 0.0
        %846 = vmatpush2.msra.mxu0 0.0
        %847 = vmatprep.mubr.f32.mxu0 0.0
        %848 = vmatmul.mubr.f32.gmra.mxu0 %v756
        %v849 = vpop.f32.mrf.mxu0
        %v850 = vadd.f32 %v752, %v849
        %v851 = vpop.f32.mrf.mxu0
        %852 = vmatprep.mubr.f32.mxu0 0.0
        %853 = vmatmul.mubr.f32.gmra.mxu0 %v759
        %v854 = vpop.f32.mrf.mxu0
        %v855 = vadd.f32 %v752, %v854
        %v856 = vpop.f32.mrf.mxu0
        %857 = vmatprep.mubr.f32.mxu0 0.0
        %858 = vmatmul.mubr.f32.gmra.mxu0 %v762
        %v859 = vpop.f32.mrf.mxu0
        %v860 = vadd.f32 %v752, %v859
        %v861 = vpop.f32.mrf.mxu0
        %862 = vmatprep.mubr.f32.mxu0 0.0
        %863 = vmatmul.mubr.f32.gmra.mxu0 %v765
        %v864 = vpop.f32.mrf.mxu0
        %v865 = vadd.f32 %v752, %v864
        %v866 = vpop.f32.mrf.mxu0
        %867 = vmatprep.mubr.f32.mxu0 0.0
        %868 = vmatmul.mubr.f32.gmra.mxu0 %v768
        %v869 = vpop.f32.mrf.mxu0
        %v870 = vadd.f32 %v752, %v869
        %v871 = vpop.f32.mrf.mxu0
        %872 = vmatprep.mubr.f32.mxu0 0.0
        %873 = vmatmul.mubr.f32.gmra.mxu0 %v771
        %v874 = vpop.f32.mrf.mxu0
        %v875 = vadd.f32 %v752, %v874
        %v876 = vpop.f32.mrf.mxu0
        %877 = vmatprep.mubr.f32.mxu0 0.0
        %878 = vmatmul.mubr.f32.gmra.mxu0 %v774
        %v879 = vpop.f32.mrf.mxu0
        %v880 = vadd.f32 %v752, %v879
        %v881 = vpop.f32.mrf.mxu0
        %882 = vmatprep.mubr.f32.mxu0 0.0
        %883 = vmatmul.mubr.f32.gmra.mxu0 %v777
        %v884 = vpop.f32.mrf.mxu0
        %v885 = vadd.f32 %v752, %v884
        %v886 = vpop.f32.mrf.mxu0
        %887 = vdwg.mxu0
        %v888 = vmax.f32 %v850, 0.0
        %v889 = vmax.f32 %v855, 0.0
        %v890 = vmax.f32 %v860, 0.0
        %v891 = vmax.f32 %v865, 0.0
        %v892 = vmax.f32 %v870, 0.0
        %v893 = vmax.f32 %v875, 0.0
        %v894 = vmax.f32 %v880, 0.0
        %v895 = vmax.f32 %v885, 0.0
        %896 = vst.msk [vmem:[#allocation3] sm:$0xff] %vm679, 0.0
        %vm897 = vcmask 58368
        %898 = vst.msk [vmem:[#allocation3 + $0x8] sm:$0x3] %vm897, 0.0
        %899 = vst.msk [vmem:[#allocation3 + $0x10] sm:$0xff] %vm679, 0.0
        %900 = vst.msk [vmem:[#allocation3 + $0x18] sm:$0x3] %vm897, 0.0
        %901 = vst.msk [vmem:[#allocation3 + $0x20] sm:$0xff] %vm679, 0.0
        %902 = vst.msk [vmem:[#allocation3 + $0x28] sm:$0x3] %vm897, 0.0
        %903 = vst.msk [vmem:[#allocation3 + $0x30] sm:$0xff] %vm679, 0.0
        %904 = vst.msk [vmem:[#allocation3 + $0x38] sm:$0x3] %vm897, 0.0
        %905 = vst.msk [vmem:[#allocation3 + $0x40] sm:$0xff] %vm679, 0.0
        %906 = vst.msk [vmem:[#allocation3 + $0x48] sm:$0x3] %vm897, 0.0
        %907 = vst.msk [vmem:[#allocation3 + $0x50] sm:$0xff] %vm679, 0.0
        %908 = vst.msk [vmem:[#allocation3 + $0x58] sm:$0x3] %vm897, 0.0
        %909 = vst.msk [vmem:[#allocation3 + $0x60] sm:$0xff] %vm679, 0.0
        %910 = vst.msk [vmem:[#allocation3 + $0x68] sm:$0x3] %vm897, 0.0
        %911 = vst.msk [vmem:[#allocation3 + $0x70] sm:$0xff] %vm679, 0.0
        %912 = vst.msk [vmem:[#allocation3 + $0x78] sm:$0x3] %vm897, 0.0
        %913 = vst.msk [vmem:[#allocation3 + $0x80] sm:$0xff] %vm679, 0.0
        %914 = vst.msk [vmem:[#allocation3 + $0x88] sm:$0x3] %vm897, 0.0
        %915 = vst.msk [vmem:[#allocation3 + $0x90] sm:$0xff] %vm679, 0.0
        %916 = vst.msk [vmem:[#allocation3 + $0x98] sm:$0x3] %vm897, 0.0
        %s917 = scalar_lea.vmem [#allocation3], 16
        %918 = vst.msk [vmem:[%s917 + $0x1] sm:$0xff] %vm679, %v888
        %919 = vst.msk [vmem:[%s917 + $0x11] sm:$0xff] %vm679, %v889
        %920 = vst.msk [vmem:[%s917 + $0x21] sm:$0xff] %vm679, %v890
        %921 = vst.msk [vmem:[%s917 + $0x31] sm:$0xff] %vm679, %v891
        %922 = vst.msk [vmem:[%s917 + $0x41] sm:$0xff] %vm679, %v892
        %923 = vst.msk [vmem:[%s917 + $0x51] sm:$0xff] %vm679, %v893
        %924 = vst.msk [vmem:[%s917 + $0x61] sm:$0xff] %vm679, %v894
        %925 = vst.msk [vmem:[%s917 + $0x71] sm:$0xff] %vm679, %v895
        %v926 = vld [vmem:[#allocation3] sm:$0xff]
        %v927 = vld [vmem:[#allocation3 + $0x10] sm:$0xff]
        %v928 = vld [vmem:[#allocation3 + $0x20] sm:$0xff]
        %v929 = vld [vmem:[#allocation3 + $0x30] sm:$0xff]
        %v930 = vld [vmem:[#allocation3 + $0x40] sm:$0xff]
        %v931 = vld [vmem:[#allocation3 + $0x50] sm:$0xff]
        %v932 = vld [vmem:[#allocation3 + $0x60] sm:$0xff]
        %v933 = vld [vmem:[#allocation3 + $0x70] sm:$0xff]
        %v934 = vld [vmem:[#allocation3 + $0x1] sm:$0xff]
        %v935 = vld [vmem:[#allocation3 + $0x11] sm:$0xff]
        %v936 = vld [vmem:[#allocation3 + $0x21] sm:$0xff]
        %v937 = vld [vmem:[#allocation3 + $0x31] sm:$0xff]
        %v938 = vld [vmem:[#allocation3 + $0x41] sm:$0xff]
        %v939 = vld [vmem:[#allocation3 + $0x51] sm:$0xff]
        %v940 = vld [vmem:[#allocation3 + $0x61] sm:$0xff]
        %v941 = vld [vmem:[#allocation3 + $0x71] sm:$0xff]
        %v942 = vld [vmem:[#allocation3 + $0x2] sm:$0xff]
        %v943 = vld [vmem:[#allocation3 + $0x12] sm:$0xff]
        %v944 = vld [vmem:[#allocation3 + $0x22] sm:$0xff]
        %v945 = vld [vmem:[#allocation3 + $0x32] sm:$0xff]
        %v946 = vld [vmem:[#allocation3 + $0x42] sm:$0xff]
        %v947 = vld [vmem:[#allocation3 + $0x52] sm:$0xff]
        %v948 = vld [vmem:[#allocation3 + $0x62] sm:$0xff]
        %v949 = vld [vmem:[#allocation3 + $0x72] sm:$0xff]
        %v950 = vld [vmem:[%s917] sm:$0xff]
        %v951 = vld [vmem:[%s917 + $0x10] sm:$0xff]
        %v952 = vld [vmem:[%s917 + $0x20] sm:$0xff]
        %v953 = vld [vmem:[%s917 + $0x30] sm:$0xff]
        %v954 = vld [vmem:[%s917 + $0x40] sm:$0xff]
        %v955 = vld [vmem:[%s917 + $0x50] sm:$0xff]
        %v956 = vld [vmem:[%s917 + $0x60] sm:$0xff]
        %v957 = vld [vmem:[%s917 + $0x70] sm:$0xff]
        %v958 = vld [vmem:[%s917 + $0x1] sm:$0xff]
        %v959 = vld [vmem:[%s917 + $0x11] sm:$0xff]
        %v960 = vld [vmem:[%s917 + $0x21] sm:$0xff]
        %v961 = vld [vmem:[%s917 + $0x31] sm:$0xff]
        %v962 = vld [vmem:[%s917 + $0x41] sm:$0xff]
        %v963 = vld [vmem:[%s917 + $0x51] sm:$0xff]
        %v964 = vld [vmem:[%s917 + $0x61] sm:$0xff]
        %v965 = vld [vmem:[%s917 + $0x71] sm:$0xff]
        %v966 = vld [vmem:[%s917 + $0x2] sm:$0xff]
        %v967 = vld [vmem:[%s917 + $0x12] sm:$0xff]
        %v968 = vld [vmem:[%s917 + $0x22] sm:$0xff]
        %v969 = vld [vmem:[%s917 + $0x32] sm:$0xff]
        %v970 = vld [vmem:[%s917 + $0x42] sm:$0xff]
        %v971 = vld [vmem:[%s917 + $0x52] sm:$0xff]
        %v972 = vld [vmem:[%s917 + $0x62] sm:$0xff]
        %v973 = vld [vmem:[%s917 + $0x72] sm:$0xff]
        %s974 = scalar_lea.vmem [#allocation3], 32
        %v975 = vld [vmem:[%s974] sm:$0xff]
        %v976 = vld [vmem:[%s974 + $0x10] sm:$0xff]
        %v977 = vld [vmem:[%s974 + $0x20] sm:$0xff]
        %v978 = vld [vmem:[%s974 + $0x30] sm:$0xff]
        %v979 = vld [vmem:[%s974 + $0x40] sm:$0xff]
        %v980 = vld [vmem:[%s974 + $0x50] sm:$0xff]
        %v981 = vld [vmem:[%s974 + $0x60] sm:$0xff]
        %v982 = vld [vmem:[%s974 + $0x70] sm:$0xff]
        %v983 = vld [vmem:[%s974 + $0x1] sm:$0xff]
        %v984 = vld [vmem:[%s974 + $0x11] sm:$0xff]
        %v985 = vld [vmem:[%s974 + $0x21] sm:$0xff]
        %v986 = vld [vmem:[%s974 + $0x31] sm:$0xff]
        %v987 = vld [vmem:[%s974 + $0x41] sm:$0xff]
        %v988 = vld [vmem:[%s974 + $0x51] sm:$0xff]
        %v989 = vld [vmem:[%s974 + $0x61] sm:$0xff]
        %v990 = vld [vmem:[%s974 + $0x71] sm:$0xff]
        %v991 = vld [vmem:[%s974 + $0x2] sm:$0xff]
        %v992 = vld [vmem:[%s974 + $0x12] sm:$0xff]
        %v993 = vld [vmem:[%s974 + $0x22] sm:$0xff]
        %v994 = vld [vmem:[%s974 + $0x32] sm:$0xff]
        %v995 = vld [vmem:[%s974 + $0x42] sm:$0xff]
        %v996 = vld [vmem:[%s974 + $0x52] sm:$0xff]
        %v997 = vld [vmem:[%s974 + $0x62] sm:$0xff]
        %v998 = vld [vmem:[%s974 + $0x72] sm:$0xff]
        %1007 = vrot.lane.b32.xlu0 %v934, 8
        %v1008 = vpop.permute.xlu0 %1007
        %1009 = vrot.lane.b32.xlu0 %v935, 8
        %v1010 = vpop.permute.xlu0 %1009
        %1011 = vrot.lane.b32.xlu0 %v936, 8
        %v1012 = vpop.permute.xlu0 %1011
        %1013 = vrot.lane.b32.xlu0 %v937, 8
        %v1014 = vpop.permute.xlu0 %1013
        %1015 = vrot.lane.b32.xlu0 %v938, 8
        %v1016 = vpop.permute.xlu0 %1015
        %1017 = vrot.lane.b32.xlu0 %v939, 8
        %v1018 = vpop.permute.xlu0 %1017
        %1019 = vrot.lane.b32.xlu0 %v940, 8
        %v1020 = vpop.permute.xlu0 %1019
        %1021 = vrot.lane.b32.xlu0 %v941, 8
        %v1022 = vpop.permute.xlu0 %1021
        %1039 = vrot.lane.b32.xlu0 %v942, 16
        %v1040 = vpop.permute.xlu0 %1039
        %1041 = vrot.lane.b32.xlu0 %v943, 16
        %v1042 = vpop.permute.xlu0 %1041
        %1043 = vrot.lane.b32.xlu0 %v944, 16
        %v1044 = vpop.permute.xlu0 %1043
        %1045 = vrot.lane.b32.xlu0 %v945, 16
        %v1046 = vpop.permute.xlu0 %1045
        %1047 = vrot.lane.b32.xlu0 %v946, 16
        %v1048 = vpop.permute.xlu0 %1047
        %1049 = vrot.lane.b32.xlu0 %v947, 16
        %v1050 = vpop.permute.xlu0 %1049
        %1051 = vrot.lane.b32.xlu0 %v948, 16
        %v1052 = vpop.permute.xlu0 %1051
        %1053 = vrot.lane.b32.xlu0 %v949, 16
        %v1054 = vpop.permute.xlu0 %1053
        %1071 = vrot.lane.b32.xlu0 %v950, 24
        %v1072 = vpop.permute.xlu0 %1071
        %1073 = vrot.lane.b32.xlu0 %v951, 24
        %v1074 = vpop.permute.xlu0 %1073
        %1075 = vrot.lane.b32.xlu0 %v952, 24
        %v1076 = vpop.permute.xlu0 %1075
        %1077 = vrot.lane.b32.xlu0 %v953, 24
        %v1078 = vpop.permute.xlu0 %1077
        %1079 = vrot.lane.b32.xlu0 %v954, 24
        %v1080 = vpop.permute.xlu0 %1079
        %1081 = vrot.lane.b32.xlu0 %v955, 24
        %v1082 = vpop.permute.xlu0 %1081
        %1083 = vrot.lane.b32.xlu0 %v956, 24
        %v1084 = vpop.permute.xlu0 %1083
        %1085 = vrot.lane.b32.xlu0 %v957, 24
        %v1086 = vpop.permute.xlu0 %1085
        %1103 = vrot.lane.b32.xlu0 %v958, 32
        %v1104 = vpop.permute.xlu0 %1103
        %1105 = vrot.lane.b32.xlu0 %v959, 32
        %v1106 = vpop.permute.xlu0 %1105
        %1107 = vrot.lane.b32.xlu0 %v960, 32
        %v1108 = vpop.permute.xlu0 %1107
        %1109 = vrot.lane.b32.xlu0 %v961, 32
        %v1110 = vpop.permute.xlu0 %1109
        %1111 = vrot.lane.b32.xlu0 %v962, 32
        %v1112 = vpop.permute.xlu0 %1111
        %1113 = vrot.lane.b32.xlu0 %v963, 32
        %v1114 = vpop.permute.xlu0 %1113
        %1115 = vrot.lane.b32.xlu0 %v964, 32
        %v1116 = vpop.permute.xlu0 %1115
        %1117 = vrot.lane.b32.xlu0 %v965, 32
        %v1118 = vpop.permute.xlu0 %1117
        %1135 = vrot.lane.b32.xlu0 %v966, 40
        %v1136 = vpop.permute.xlu0 %1135
        %1137 = vrot.lane.b32.xlu0 %v967, 40
        %v1138 = vpop.permute.xlu0 %1137
        %1139 = vrot.lane.b32.xlu0 %v968, 40
        %v1140 = vpop.permute.xlu0 %1139
        %1141 = vrot.lane.b32.xlu0 %v969, 40
        %v1142 = vpop.permute.xlu0 %1141
        %1143 = vrot.lane.b32.xlu0 %v970, 40
        %v1144 = vpop.permute.xlu0 %1143
        %1145 = vrot.lane.b32.xlu0 %v971, 40
        %v1146 = vpop.permute.xlu0 %1145
        %1147 = vrot.lane.b32.xlu0 %v972, 40
        %v1148 = vpop.permute.xlu0 %1147
        %1149 = vrot.lane.b32.xlu0 %v973, 40
        %v1150 = vpop.permute.xlu0 %1149
        %1167 = vrot.lane.b32.xlu0 %v975, 48
        %v1168 = vpop.permute.xlu0 %1167
        %1169 = vrot.lane.b32.xlu0 %v976, 48
        %v1170 = vpop.permute.xlu0 %1169
        %1171 = vrot.lane.b32.xlu0 %v977, 48
        %v1172 = vpop.permute.xlu0 %1171
        %1173 = vrot.lane.b32.xlu0 %v978, 48
        %v1174 = vpop.permute.xlu0 %1173
        %1175 = vrot.lane.b32.xlu0 %v979, 48
        %v1176 = vpop.permute.xlu0 %1175
        %1177 = vrot.lane.b32.xlu0 %v980, 48
        %v1178 = vpop.permute.xlu0 %1177
        %1179 = vrot.lane.b32.xlu0 %v981, 48
        %v1180 = vpop.permute.xlu0 %1179
        %1181 = vrot.lane.b32.xlu0 %v982, 48
        %v1182 = vpop.permute.xlu0 %1181
        %1199 = vrot.lane.b32.xlu0 %v983, 56
        %v1200 = vpop.permute.xlu0 %1199
        %1201 = vrot.lane.b32.xlu0 %v984, 56
        %v1202 = vpop.permute.xlu0 %1201
        %1203 = vrot.lane.b32.xlu0 %v985, 56
        %v1204 = vpop.permute.xlu0 %1203
        %1205 = vrot.lane.b32.xlu0 %v986, 56
        %v1206 = vpop.permute.xlu0 %1205
        %1207 = vrot.lane.b32.xlu0 %v987, 56
        %v1208 = vpop.permute.xlu0 %1207
        %1209 = vrot.lane.b32.xlu0 %v988, 56
        %v1210 = vpop.permute.xlu0 %1209
        %1211 = vrot.lane.b32.xlu0 %v989, 56
        %v1212 = vpop.permute.xlu0 %1211
        %1213 = vrot.lane.b32.xlu0 %v990, 56
        %v1214 = vpop.permute.xlu0 %1213
        %1231 = vrot.lane.b32.xlu0 %v991, 64
        %v1232 = vpop.permute.xlu0 %1231
        %1233 = vrot.lane.b32.xlu0 %v992, 64
        %v1234 = vpop.permute.xlu0 %1233
        %1235 = vrot.lane.b32.xlu0 %v993, 64
        %v1236 = vpop.permute.xlu0 %1235
        %1237 = vrot.lane.b32.xlu0 %v994, 64
        %v1238 = vpop.permute.xlu0 %1237
        %1239 = vrot.lane.b32.xlu0 %v995, 64
        %v1240 = vpop.permute.xlu0 %1239
        %1241 = vrot.lane.b32.xlu0 %v996, 64
        %v1242 = vpop.permute.xlu0 %1241
        %1243 = vrot.lane.b32.xlu0 %v997, 64
        %v1244 = vpop.permute.xlu0 %1243
        %1245 = vrot.lane.b32.xlu0 %v998, 64
        %v1246 = vpop.permute.xlu0 %1245
        %v1255 = vsel %vm679, %v926, %v1008
        %v1256 = vsel %vm679, %v927, %v1010
        %v1257 = vsel %vm679, %v928, %v1012
        %v1258 = vsel %vm679, %v929, %v1014
        %v1259 = vsel %vm679, %v930, %v1016
        %v1260 = vsel %vm679, %v931, %v1018
        %v1261 = vsel %vm679, %v932, %v1020
        %v1262 = vsel %vm679, %v933, %v1022
        %v1263 = vsel %vm697, %v1255, %v1040
        %v1264 = vsel %vm697, %v1256, %v1042
        %v1265 = vsel %vm697, %v1257, %v1044
        %v1266 = vsel %vm697, %v1258, %v1046
        %v1267 = vsel %vm697, %v1259, %v1048
        %v1268 = vsel %vm697, %v1260, %v1050
        %v1269 = vsel %vm697, %v1261, %v1052
        %v1270 = vsel %vm697, %v1262, %v1054
        %v1271 = vsel %vm715, %v1263, %v1072
        %v1272 = vsel %vm715, %v1264, %v1074
        %v1273 = vsel %vm715, %v1265, %v1076
        %v1274 = vsel %vm715, %v1266, %v1078
        %v1275 = vsel %vm715, %v1267, %v1080
        %v1276 = vsel %vm715, %v1268, %v1082
        %v1277 = vsel %vm715, %v1269, %v1084
        %v1278 = vsel %vm715, %v1270, %v1086
        %v1279 = vsel %vm733, %v1271, %v1104
        %v1280 = vsel %vm733, %v1272, %v1106
        %v1281 = vsel %vm733, %v1273, %v1108
        %v1282 = vsel %vm733, %v1274, %v1110
        %v1283 = vsel %vm733, %v1275, %v1112
        %v1284 = vsel %vm733, %v1276, %v1114
        %v1285 = vsel %vm733, %v1277, %v1116
        %v1286 = vsel %vm733, %v1278, %v1118
        %vm1287 = vcmask 326656
        %v1288 = vsel %vm1287, %v1279, %v1136
        %v1289 = vsel %vm1287, %v1280, %v1138
        %v1290 = vsel %vm1287, %v1281, %v1140
        %v1291 = vsel %vm1287, %v1282, %v1142
        %v1292 = vsel %vm1287, %v1283, %v1144
        %v1293 = vsel %vm1287, %v1284, %v1146
        %v1294 = vsel %vm1287, %v1285, %v1148
        %v1295 = vsel %vm1287, %v1286, %v1150
        %vm1296 = vcmask 392192
        %v1297 = vsel %vm1296, %v1288, %v1168
        %v1298 = vsel %vm1296, %v1289, %v1170
        %v1299 = vsel %vm1296, %v1290, %v1172
        %v1300 = vsel %vm1296, %v1291, %v1174
        %v1301 = vsel %vm1296, %v1292, %v1176
        %v1302 = vsel %vm1296, %v1293, %v1178
        %v1303 = vsel %vm1296, %v1294, %v1180
        %v1304 = vsel %vm1296, %v1295, %v1182
        %vm1305 = vcmask 457728
        %v1306 = vsel %vm1305, %v1297, %v1200
        %v1307 = vsel %vm1305, %v1298, %v1202
        %v1308 = vsel %vm1305, %v1299, %v1204
        %v1309 = vsel %vm1305, %v1300, %v1206
        %v1310 = vsel %vm1305, %v1301, %v1208
        %v1311 = vsel %vm1305, %v1302, %v1210
        %v1312 = vsel %vm1305, %v1303, %v1212
        %v1313 = vsel %vm1305, %v1304, %v1214
        %vm1314 = vcmask 523264
        %v1315 = vsel %vm1314, %v1306, %v1232
        %v1316 = vsel %vm1314, %v1307, %v1234
        %v1317 = vsel %vm1314, %v1308, %v1236
        %v1318 = vsel %vm1314, %v1309, %v1238
        %v1319 = vsel %vm1314, %v1310, %v1240
        %v1320 = vsel %vm1314, %v1311, %v1242
        %v1321 = vsel %vm1314, %v1312, %v1244
        %v1322 = vsel %vm1314, %v1313, %v1246
        %v1323 = vld [vmem:[%s3] sm:$0xff]
        %v1324 = vld [vmem:[%s3 + $0x8] sm:$0xff]
        %v1325 = vld [vmem:[%s3 + $0x10] sm:$0xff]
        %v1326 = vld [vmem:[%s3 + $0x18] sm:$0xff]
        %v1327 = vld [vmem:[%s3 + $0x20] sm:$0xff]
        %v1328 = vld [vmem:[%s3 + $0x28] sm:$0xff]
        %v1329 = vld [vmem:[%s3 + $0x30] sm:$0xff]
        %v1330 = vld [vmem:[%s3 + $0x38] sm:$0xff]
        %v1331 = vld [vmem:[%s3 + $0x40] sm:$0xff]
        %v1332 = vld [vmem:[%s4] sm:$0x1]
        %v1334 = vlaneseq
        %v1335 = vshrl.u32 %v1334, 7
        %v1336 = vsub.s32 0, %v1335
        %v1337 = vrot.slane %v1332, %v1336
        %vm1339 = vcmask 588800
        %v1341 = vsel %vm1339, %v1315, 0
        %v1344 = vsel %vm1339, %v1316, 0
        %v1347 = vsel %vm1339, %v1317, 0
        %v1350 = vsel %vm1339, %v1318, 0
        %v1353 = vsel %vm1339, %v1319, 0
        %v1356 = vsel %vm1339, %v1320, 0
        %v1359 = vsel %vm1339, %v1321, 0
        %v1362 = vsel %vm1339, %v1322, 0
        %1364 = vmatprep.subr.mxu0 0.0
        %1365 = vmatpush1.msra.mxu0 0.0
        %1366 = vmatprep.subr.mxu0 0.0
        %1367 = vmatpush1.msra.mxu0 0.0
        %1368 = vmatprep.subr.mxu0 0.0
        %1369 = vmatpush1.msra.mxu0 0.0
        %1370 = vmatprep.subr.mxu0 0.0
        %1371 = vmatpush1.msra.mxu0 0.0
        %1372 = vmatprep.subr.mxu0 0.0
        %1373 = vmatpush1.msra.mxu0 0.0
        %1374 = vmatprep.subr.mxu0 0.0
        %1375 = vmatpush1.msra.mxu0 0.0
        %1376 = vmatprep.subr.mxu0 0.0
        %1377 = vmatpush1.msra.mxu0 0.0
        %1378 = vmatprep.subr.mxu0 0.0
        %1379 = vmatpush1.msra.mxu0 %v1331
        %1380 = vmatprep.subr.mxu0 0.0
        %1381 = vmatpush1.msra.mxu0 %v1330
        %1382 = vmatprep.subr.mxu0 0.0
        %1383 = vmatpush1.msra.mxu0 %v1329
        %1384 = vmatprep.subr.mxu0 0.0
        %1385 = vmatpush1.msra.mxu0 %v1328
        %1386 = vmatprep.subr.mxu0 0.0
        %1387 = vmatpush1.msra.mxu0 %v1327
        %1388 = vmatprep.subr.mxu0 0.0
        %1389 = vmatpush1.msra.mxu0 %v1326
        %1390 = vmatprep.subr.mxu0 0.0
        %1391 = vmatpush1.msra.mxu0 %v1325
        %1392 = vmatprep.subr.mxu0 0.0
        %1393 = vmatpush1.msra.mxu0 %v1324
        %1394 = vmatprep.subr.mxu0 0.0
        %1395 = vmatpush1.msra.mxu0 %v1323
        %1396 = vmatprep.subr.mxu0 0.0
        %1397 = vmatpush2.msra.mxu0 0.0
        %1398 = vmatprep.subr.mxu0 0.0
        %1399 = vmatpush2.msra.mxu0 0.0
        %1400 = vmatprep.subr.mxu0 0.0
        %1401 = vmatpush2.msra.mxu0 0.0
        %1402 = vmatprep.subr.mxu0 0.0
        %1403 = vmatpush2.msra.mxu0 0.0
        %1404 = vmatprep.subr.mxu0 0.0
        %1405 = vmatpush2.msra.mxu0 0.0
        %1406 = vmatprep.subr.mxu0 0.0
        %1407 = vmatpush2.msra.mxu0 0.0
        %1408 = vmatprep.subr.mxu0 0.0
        %1409 = vmatpush2.msra.mxu0 0.0
        %1410 = vmatprep.subr.mxu0 0.0
        %1411 = vmatpush2.msra.mxu0 0.0
        %1412 = vmatprep.subr.mxu0 0.0
        %1413 = vmatpush2.msra.mxu0 0.0
        %1414 = vmatprep.subr.mxu0 0.0
        %1415 = vmatpush2.msra.mxu0 0.0
        %1416 = vmatprep.subr.mxu0 0.0
        %1417 = vmatpush2.msra.mxu0 0.0
        %1418 = vmatprep.subr.mxu0 0.0
        %1419 = vmatpush2.msra.mxu0 0.0
        %1420 = vmatprep.subr.mxu0 0.0
        %1421 = vmatpush2.msra.mxu0 0.0
        %1422 = vmatprep.subr.mxu0 0.0
        %1423 = vmatpush2.msra.mxu0 0.0
        %1424 = vmatprep.subr.mxu0 0.0
        %1425 = vmatpush2.msra.mxu0 0.0
        %1426 = vmatprep.subr.mxu0 0.0
        %1427 = vmatpush2.msra.mxu0 0.0
        %1428 = vmatprep.mubr.f32.mxu0 0.0
        %1429 = vmatmul.mubr.f32.gmra.mxu0 %v1341
        %v1430 = vpop.f32.mrf.mxu0
        %v1431 = vadd.f32 %v1337, %v1430
        %v1432 = vpop.f32.mrf.mxu0
        %1433 = vmatprep.mubr.f32.mxu0 0.0
        %1434 = vmatmul.mubr.f32.gmra.mxu0 %v1344
        %v1435 = vpop.f32.mrf.mxu0
        %v1436 = vadd.f32 %v1337, %v1435
        %v1437 = vpop.f32.mrf.mxu0
        %1438 = vmatprep.mubr.f32.mxu0 0.0
        %1439 = vmatmul.mubr.f32.gmra.mxu0 %v1347
        %v1440 = vpop.f32.mrf.mxu0
        %v1441 = vadd.f32 %v1337, %v1440
        %v1442 = vpop.f32.mrf.mxu0
        %1443 = vmatprep.mubr.f32.mxu0 0.0
        %1444 = vmatmul.mubr.f32.gmra.mxu0 %v1350
        %v1445 = vpop.f32.mrf.mxu0
        %v1446 = vadd.f32 %v1337, %v1445
        %v1447 = vpop.f32.mrf.mxu0
        %1448 = vmatprep.mubr.f32.mxu0 0.0
        %1449 = vmatmul.mubr.f32.gmra.mxu0 %v1353
        %v1450 = vpop.f32.mrf.mxu0
        %v1451 = vadd.f32 %v1337, %v1450
        %v1452 = vpop.f32.mrf.mxu0
        %1453 = vmatprep.mubr.f32.mxu0 0.0
        %1454 = vmatmul.mubr.f32.gmra.mxu0 %v1356
        %v1455 = vpop.f32.mrf.mxu0
        %v1456 = vadd.f32 %v1337, %v1455
        %v1457 = vpop.f32.mrf.mxu0
        %1458 = vmatprep.mubr.f32.mxu0 0.0
        %1459 = vmatmul.mubr.f32.gmra.mxu0 %v1359
        %v1460 = vpop.f32.mrf.mxu0
        %v1461 = vadd.f32 %v1337, %v1460
        %v1462 = vpop.f32.mrf.mxu0
        %1463 = vmatprep.mubr.f32.mxu0 0.0
        %1464 = vmatmul.mubr.f32.gmra.mxu0 %v1362
        %v1465 = vpop.f32.mrf.mxu0
        %v1466 = vadd.f32 %v1337, %v1465
        %v1467 = vpop.f32.mrf.mxu0
        %1468 = vdwg.mxu0
        %v1469 = vmax.f32 %v1431, 0.0
        %v1470 = vmax.f32 %v1436, 0.0
        %v1471 = vmax.f32 %v1441, 0.0
        %v1472 = vmax.f32 %v1446, 0.0
        %v1473 = vmax.f32 %v1451, 0.0
        %v1474 = vmax.f32 %v1456, 0.0
        %v1475 = vmax.f32 %v1461, 0.0
        %v1476 = vmax.f32 %v1466, 0.0
        %1477 = vst.msk [vmem:[%s217] sm:$0xff] %vm679, %v1469
        %1478 = vst.msk [vmem:[%s217 + $0x8] sm:$0xff] %vm679, %v1470
        %1479 = vst.msk [vmem:[%s217 + $0x10] sm:$0xff] %vm679, %v1471
        %1480 = vst.msk [vmem:[%s217 + $0x18] sm:$0xff] %vm679, %v1472
        %1481 = vst.msk [vmem:[%s217 + $0x20] sm:$0xff] %vm679, %v1473
        %1482 = vst.msk [vmem:[%s217 + $0x28] sm:$0xff] %vm679, %v1474
        %1483 = vst.msk [vmem:[%s217 + $0x30] sm:$0xff] %vm679, %v1475
        %1484 = vst.msk [vmem:[%s217 + $0x38] sm:$0xff] %vm679, %v1476
        %s1485 = sand.u32 %s137, 1
        %s1486 = scalar_lea.sflag [#allocation5], %s1485
        %s1487 = sand.u32 %s137, 1
        %s1488 = smul.addr %s1487, 64
        %s1489 = scalar_lea.vmem [#allocation4], %s1488
        // Predicated region
        $region41: #{tpu_custom_call.1} parent=39 // pred_check
          %p1490 = pneg %p147
        $region42: #{tpu_custom_call.1} parent=39 // pred_check_branch
          %1492 = sbr.rel (%p1490) target = $region44
        $region43: #{tpu_custom_call.1} parent=39 // pred_region
          %s1494 = ssub.s32 1024, 1024
          %1495 = vsyncadd %s1486, %s1494
          %s1496 = smul.addr %s19, 8
          %s1497 = smul.addr %s1496, 128
          %s1498 = scalar_lea.hbm %s5, %s1497
          %s1499 = sshll.u32 %s1489, 4
          %s1500 = int_to_ptr.vmem [resolvable:$true] %s1499
          %1505 = dma.vmem_to_hbm [thread:$0]  %s1500, 1024, %s1498, %s1486, 128, 128, 8
        $region44: #{tpu_custom_call.1} parent=39 // pred_fallthru
          _
      $region40: #{tpu_custom_call.1} parent=5 // pred_fallthru
        _
      %p1506 = scmp.le.s32.totalorder 2, %s14
      // Predicated region
      $region45: #{tpu_custom_call.1} parent=5 // pred_check
        %p1507 = pneg %p1506
      $region46: #{tpu_custom_call.1} parent=5 // pred_check_branch
        %1509 = sbr.rel (%p1507) target = $region48
      $region47: #{tpu_custom_call.1} parent=5 // pred_region
        %s1510 = ssub.s32 %s14, 2
        // Predicated region
        $region49: #{tpu_custom_call.1} parent=47 // pred_check
          %p1511 = pneg %p153
        $region50: #{tpu_custom_call.1} parent=47 // pred_check_branch
          %1513 = sbr.rel (%p1511) target = $region52
        $region51: #{tpu_custom_call.1} parent=47 // pred_region
          %s1514 = sand.u32 %s138, 1
          %s1515 = scalar_lea.sflag [#allocation5], %s1514
          %s1516 = sand.u32 %s138, 1
          %s1517 = smul.addr %s1516, 64
          %s1518 = scalar_lea.vmem [#allocation4], %s1517
          %1519 = dma.done %s1515, 1024
        $region52: #{tpu_custom_call.1} parent=47 // pred_fallthru
          _
      $region48: #{tpu_custom_call.1} parent=5 // pred_fallthru
        _
    $region6: #{tpu_custom_call.1} parent=1 // loop_footer
      %s18 = sadd.s32 1, %s14
    $region7: #{tpu_custom_call.1} parent=1 // loop_footer_branch
      %13 = sbr.rel target = $region3
    $region8: #{tpu_custom_call.1} parent=1 // loop_exit
      _
    %1520 = vsyncpa [#allocation5], 1
    %s1521 = scalar_lea.sflag [#allocation5], 1
    %1522 = vsyncpa %s1521, 1

</llo_original>
